<compile_context>
chip_gen: v7x
topology: tpu7x:2x2x1
jax: 0.10.0
libtpu: 0.0.40
codegen_flags: <defaults>
</compile_context>

<pallas_src>
import jax
import jax.numpy as jnp
from jax.experimental import pallas as pl
from jax.experimental.pallas import tpu as pltpu

LANE = 128          # TPU lane width / packed-slab width
H_PAD = 128         # hidden 64 padded to 128 lanes inside the slab
OUT_PAD = 8         # logits array width (rows 0..2 valid); was 128
BIAS_ROWS = 8       # sublane-aligned bias block (rows 0,1,2 used)


def _round_up(n, m):
    return ((n + m - 1) // m) * m


def _make_dqn_kernel(w1_rows, out_width, precision):
    """Fused 3-layer MLP; params arrive as one packed [P, 128] slab."""
    o1 = w1_rows                   # end of W1 rows
    o2 = o1 + H_PAD                # end of W2 rows
    o3 = o2 + H_PAD                # end of W3 rows; biases follow

    def kernel(x_ref, p_ref, o_ref):
        x = x_ref[...]                                    # (TB, in_p8)
        w1 = p_ref[0:o1, :]                               # (in_p8, 128)
        w2 = p_ref[o1:o2, :]                              # (128, 128)
        w3 = p_ref[o2:o3, :]                              # (128, 128)
        b = p_ref[o3:o3 + BIAS_ROWS, :].astype(jnp.float32)  # (8, 128)

        h1 = jnp.dot(x, w1, preferred_element_type=jnp.float32,
                     precision=precision) + b[0:1, :]
        h1 = jnp.maximum(h1, 0.0)
        h2 = jnp.dot(h1.astype(x.dtype), w2, preferred_element_type=jnp.float32,
                     precision=precision) + b[1:2, :]
        h2 = jnp.maximum(h2, 0.0)
        out = jnp.dot(h2.astype(x.dtype), w3, preferred_element_type=jnp.float32,
                      precision=precision) + b[2:3, :]
        o_ref[...] = out[:, :out_width].astype(o_ref.dtype)

    return kernel


def pack_params(params, w1_rows, dtype):
    """Zero-pad and concatenate all weights/biases into one [P, 128] slab."""
    w1, b1, w2, b2, w3, b3 = params
    in_f, h = w1.shape
    n_out = w3.shape[1]
    W1 = jnp.zeros((w1_rows, H_PAD), dtype).at[:in_f, :h].set(w1.astype(dtype))
    W2 = jnp.zeros((H_PAD, H_PAD), dtype).at[:h, :h].set(w2.astype(dtype))
    W3 = jnp.zeros((H_PAD, H_PAD), dtype).at[:h, :n_out].set(w3.astype(dtype))
    Bs = jnp.zeros((BIAS_ROWS, H_PAD), dtype)
    Bs = Bs.at[0, :h].set(b1.reshape(-1).astype(dtype))
    Bs = Bs.at[1, :h].set(b2.reshape(-1).astype(dtype))
    Bs = Bs.at[2, :n_out].set(b3.reshape(-1).astype(dtype))
    return jnp.concatenate([W1, W2, W3, Bs], axis=0)      # (w1_rows + 264, 128)


def dqn_forward(x, params, *, batch_tile=2048, use_bf16=False):
    B, in_f = x.shape
    n_out = params[4].shape[1]
    in_p8 = _round_up(in_f, 8)      # feature dim rounded only to sublane width

    # --- batch tiling ---------------------------------------------------
    b_pad = _round_up(B, 8)
    if b_pad > batch_tile:
        tb = batch_tile
        b_pad = _round_up(B, tb)
    elif b_pad >= 16 and b_pad % 16 == 0:
        tb = b_pad // 2             # >= 2 tiles -> both TensorCores on v7x
    else:
        tb = b_pad
    n_tiles = b_pad // tb

    # --- operands ---------------------------------------------------------
    cdt = jnp.bfloat16 if use_bf16 else jnp.float32
    x_in = x.astype(cdt)
    if b_pad != B or in_p8 != in_f:
        x_in = jnp.zeros((b_pad, in_p8), cdt).at[:B, :in_f].set(x_in)

    p_slab = pack_params(params, in_p8, cdt)
    p_rows = p_slab.shape[0]

    precision = None if use_bf16 else jax.lax.Precision.HIGHEST

    out_padded = pl.pallas_call(
        _make_dqn_kernel(in_p8, OUT_PAD, precision),
        out_shape=jax.ShapeDtypeStruct((b_pad, OUT_PAD), jnp.float32),
        grid=(n_tiles,),
        in_specs=[
            pl.BlockSpec((tb, in_p8), lambda i: (i, 0)),      # batch-tiled x
            pl.BlockSpec((p_rows, LANE), lambda i: (0, 0)),   # resident params
        ],
        out_specs=pl.BlockSpec((tb, OUT_PAD), lambda i: (i, 0)),
        compiler_params=pltpu.CompilerParams(
            dimension_semantics=("parallel",)),
    )(x_in, p_slab)

    return out_padded[:B, :n_out]


def init_params(key, input_size, hidden=64, n_actions=3):
    # Deterministic init mimicking PyTorch Linear default (uniform +-1/sqrt(fan_in)).
    def linear(k, fan_in, fan_out):
        kw, kb = jax.random.split(k)
        bound = 1.0 / jnp.sqrt(fan_in)
        w = jax.random.uniform(kw, (fan_in, fan_out), jnp.float32, -bound, bound)
        b = jax.random.uniform(kb, (1, fan_out), jnp.float32, -bound, bound)
        return w, b

    k1, k2, k3 = jax.random.split(key, 3)
    w1, b1 = linear(k1, input_size, hidden)
    w2, b2 = linear(k2, hidden, hidden)
    w3, b3 = linear(k3, hidden, n_actions)
    return (w1, b1, w2, b2, w3, b3)


def dqn_reference(x, params, precision=jax.lax.Precision.HIGHEST):
    w1, b1, w2, b2, w3, b3 = params
    h1 = jax.nn.relu(jnp.dot(x, w1, precision=precision) + b1)
    h2 = jax.nn.relu(jnp.dot(h1, w2, precision=precision) + b2)
    return jnp.dot(h2, w3, precision=precision) + b3


if __name__ == "__main__":
    key = jax.random.PRNGKey(0)
    k_x, k_p = jax.random.split(key)

    input_size = 32  # DQN state vector size
    params = init_params(k_p, input_size)

    # Small batch, single tile.
    x = jax.random.normal(k_x, (8, input_size), jnp.float32)
    out = jax.block_until_ready(dqn_forward(x, params))
    ref = dqn_reference(x, params)
    assert out.shape == (8, 3)
    assert jnp.allclose(out, ref, atol=1e-5, rtol=1e-5)

    # Mid batch -> 2 tiles (both TCs on v7x); exercises multi-step grid.
    x2 = jax.random.normal(k_x, (48, input_size), jnp.float32)
    out2 = jax.block_until_ready(dqn_forward(x2, params))
    assert jnp.allclose(out2, dqn_reference(x2, params), atol=1e-5, rtol=1e-5)

    # Ragged batch + non-multiple-of-8 feature dim (hits the padding path).
    params3 = init_params(k_p, 20)
    x3 = jax.random.normal(k_x, (5, 20), jnp.float32)
    out3 = jax.block_until_ready(dqn_forward(x3, params3))
    assert out3.shape == (5, 3)
    assert jnp.allclose(out3, dqn_reference(x3, params3), atol=1e-5, rtol=1e-5)

    # Optional bf16 MXU-operand fast path (looser tolerance).
    out_bf16 = jax.block_until_ready(dqn_forward(x, params, use_bf16=True))
    assert jnp.allclose(out_bf16, ref, atol=5e-2, rtol=5e-2)

    print("KERNEL_OK")
</pallas_src>

<mosaic_0001>
module attributes {stable_mosaic.version = 11 : i64} {
  func.func @kernel(%arg0: i32, %arg1: memref<8x32xf32, #tpu.memory_space<vmem>>, %arg2: memref<296x128xf32, #tpu.memory_space<vmem>>, %arg3: memref<8x8xf32, #tpu.memory_space<vmem>>) attributes {dimension_semantics = [#tpu.dimension_semantics<parallel>], iteration_bounds = array<i64: 1>, scalar_prefetch = 0 : i64, scratch_operands = 0 : i64, tpu.core_type = #tpu.core_type<tc>, window_params = [{transform_indices = @transform_0, window_bounds = array<i64: 8, 32>}, {pipeline_mode = #tpu.pipeline_mode<synchronous>, transform_indices = @transform_1, window_bounds = array<i64: 296, 128>}, {transform_indices = @transform_2, window_bounds = array<i64: 8, 8>}]} {
    %c0 = arith.constant 0 : index
    %c0_0 = arith.constant 0 : index
    %0 = vector.load %arg1[%c0, %c0_0] : memref<8x32xf32, #tpu.memory_space<vmem>>, vector<8x32xf32>
    %c0_1 = arith.constant 0 : index
    %c0_2 = arith.constant 0 : index
    %1 = vector.load %arg2[%c0_1, %c0_2] : memref<296x128xf32, #tpu.memory_space<vmem>>, vector<32x128xf32>
    %c32 = arith.constant 32 : index
    %c0_3 = arith.constant 0 : index
    %2 = vector.load %arg2[%c32, %c0_3] : memref<296x128xf32, #tpu.memory_space<vmem>>, vector<128x128xf32>
    %c160 = arith.constant 160 : index
    %c0_4 = arith.constant 0 : index
    %3 = vector.load %arg2[%c160, %c0_4] : memref<296x128xf32, #tpu.memory_space<vmem>>, vector<128x128xf32>
    %c288 = arith.constant 288 : index
    %c0_5 = arith.constant 0 : index
    %4 = vector.load %arg2[%c288, %c0_5] : memref<296x128xf32, #tpu.memory_space<vmem>>, vector<8x128xf32>
    %cst = arith.constant dense<0.000000e+00> : vector<8x128xf32>
    %5 = tpu.matmul %0, %1, %cst {dimension_numbers = #tpu.dot_dimension_numbers<[1], [0], [0], [1], [0, 0, 1, 1], [], []>, precision = #tpu.contract_precision<fp32>} : vector<8x32xf32>, vector<32x128xf32>, vector<8x128xf32> -> vector<8x128xf32>
    %6 = vector.extract_strided_slice %4 {offsets = [0, 0], sizes = [1, 128], strides = [1, 1]} : vector<8x128xf32> to vector<1x128xf32>
    %7 = vector.broadcast %6 : vector<1x128xf32> to vector<8x128xf32>
    %8 = arith.addf %5, %7 : vector<8x128xf32>
    %cst_6 = arith.constant 0.000000e+00 : f32
    %9 = vector.broadcast %cst_6 : f32 to vector<8x128xf32>
    %10 = arith.maximumf %8, %9 : vector<8x128xf32>
    %cst_7 = arith.constant dense<0.000000e+00> : vector<8x128xf32>
    %11 = tpu.matmul %10, %2, %cst_7 {dimension_numbers = #tpu.dot_dimension_numbers<[1], [0], [0], [1], [0, 0, 1, 1], [], []>, precision = #tpu.contract_precision<fp32>} : vector<8x128xf32>, vector<128x128xf32>, vector<8x128xf32> -> vector<8x128xf32>
    %12 = vector.extract_strided_slice %4 {offsets = [1, 0], sizes = [1, 128], strides = [1, 1]} : vector<8x128xf32> to vector<1x128xf32>
    %13 = vector.broadcast %12 : vector<1x128xf32> to vector<8x128xf32>
    %14 = arith.addf %11, %13 : vector<8x128xf32>
    %cst_8 = arith.constant 0.000000e+00 : f32
    %15 = vector.broadcast %cst_8 : f32 to vector<8x128xf32>
    %16 = arith.maximumf %14, %15 : vector<8x128xf32>
    %cst_9 = arith.constant dense<0.000000e+00> : vector<8x128xf32>
    %17 = tpu.matmul %16, %3, %cst_9 {dimension_numbers = #tpu.dot_dimension_numbers<[1], [0], [0], [1], [0, 0, 1, 1], [], []>, precision = #tpu.contract_precision<fp32>} : vector<8x128xf32>, vector<128x128xf32>, vector<8x128xf32> -> vector<8x128xf32>
    %18 = vector.extract_strided_slice %4 {offsets = [2, 0], sizes = [1, 128], strides = [1, 1]} : vector<8x128xf32> to vector<1x128xf32>
    %19 = vector.broadcast %18 : vector<1x128xf32> to vector<8x128xf32>
    %20 = arith.addf %17, %19 : vector<8x128xf32>
    %21 = vector.extract_strided_slice %20 {offsets = [0, 0], sizes = [8, 8], strides = [1, 1]} : vector<8x128xf32> to vector<8x8xf32>
    %c0_10 = arith.constant 0 : index
    %c0_11 = arith.constant 0 : index
    %22 = vector.load %arg3[%c0_10, %c0_11] : memref<8x8xf32, #tpu.memory_space<vmem>>, vector<8x8xf32>
    tpu.vector_store %arg3[%c0_10, %c0_11], %21 {strides = array<i32>} : memref<8x8xf32, #tpu.memory_space<vmem>>, vector<8x8xf32>,
    return
  }
  func.func @transform_0(%arg0: i32) -> (i32, i32) {
    %c0_i32 = arith.constant 0 : i32
    %c0_i32_0 = arith.constant 0 : i32
    return %arg0, %c0_i32 : i32, i32
  }
  func.func @transform_1(%arg0: i32) -> (i32, i32) {
    %c0_i32 = arith.constant 0 : i32
    %c0_i32_0 = arith.constant 0 : i32
    %c0_i32_1 = arith.constant 0 : i32
    return %c0_i32, %c0_i32_0 : i32, i32
  }
  func.func @transform_2(%arg0: i32) -> (i32, i32) {
    %c0_i32 = arith.constant 0 : i32
    %c0_i32_0 = arith.constant 0 : i32
    return %arg0, %c0_i32 : i32, i32
  }
}

</mosaic_0001>

<llo_original>
// kernel: tpu_custom_call.1
$region0: #{tpu_custom_call.1}
  #allocation0 [shape = 'u32[]', space=smem, size = 0x4, offset = 0x4, fixed_abs, tag = 'smem constant byte address 0x4 - core index']
  #allocation1 [shape = 'u32[144,128]{1,0:T(1,128)}', space=vmem, size = 0x12000, scoped, tag = 'internal scratch']
  %s0 = inlined_call_operand.hbm [shape: f32[8,32], index: 0, kind: input, shape index: {}]
  %s1 = inlined_call_operand.hbm [shape: f32[296,128], index: 1, kind: input, shape index: {}]
  %s2 = inlined_call_operand.hbm [shape: f32[8,8], index: 2, kind: output, shape index: {}]
  %s3 = sld [smem:[#allocation0]]
  $region26: #{tpu_custom_call.1} parent=0
    _
  %s5 = ssub.s32 1, %s3
  %s6 = scalar_select 0, %s5, %s3
  $region1: #{tpu_custom_call.1} parent=0
    #allocation2 [shape = 'u8[4096]{0}', space=vmem, size = 0x1000, scoped, tag = 'input window, operand 0, single buffered']
    #allocation3 [shape = 's32[1]{0}', space=sflag, size = 0x4, scoped, tag = 'scoped memory for tpu_custom_call.1']
    #allocation4 [shape = 's32[1]{0}', space=sflag, size = 0x4, scoped, tag = 'scoped memory for tpu_custom_call.1']
    #allocation5 [shape = 'u8[151552]{0}', space=vmem, size = 0x25000, scoped, tag = 'input window, operand 1, single buffered']
    #allocation6 [shape = 's32[1]{0}', space=sflag, size = 0x4, scoped, tag = 'scoped memory for tpu_custom_call.1']
    #allocation7 [shape = 'u8[4096]{0}', space=vmem, size = 0x1000, scoped, tag = 'output window, operand 0, single buffered']
    %7 = vsyncpa [#allocation3], 0
    %8 = vsyncpa [#allocation6], 0
    %9 = vsyncpa [#allocation4], 0
    // Predicated region
    $region2: #{tpu_custom_call.1} parent=1 // pred_check
      _
    $region3: #{tpu_custom_call.1} parent=1 // pred_check_branch
      %11 = sbr.rel (0) target = $region5
    $region4: #{tpu_custom_call.1} parent=1 // pred_region
      %s13 = ssub.s32 128, 128
      %14 = vsyncadd [#allocation3], %s13
      %s16 = sshll.u32 [#allocation2], 4
      %s17 = int_to_ptr.vmem [resolvable:$true] %s16
      %19 = dma.hbm_to_vmem [thread:$0]  %s0, 128, %s17, [#allocation3]
    $region5: #{tpu_custom_call.1} parent=1 // pred_fallthru
      _
    // Predicated region
    $region6: #{tpu_custom_call.1} parent=1 // pred_check
      _
    $region7: #{tpu_custom_call.1} parent=1 // pred_check_branch
      %21 = sbr.rel (0) target = $region9
    $region8: #{tpu_custom_call.1} parent=1 // pred_region
      %s23 = ssub.s32 4736, 4736
      %24 = vsyncadd [#allocation6], %s23
      %s25 = sshll.u32 [#allocation5], 4
      %s26 = int_to_ptr.vmem [resolvable:$true] %s25
      %31 = dma.hbm_to_vmem [thread:$0]  %s1, 4736, %s26, [#allocation6], 128, 128, 8
    $region9: #{tpu_custom_call.1} parent=1 // pred_fallthru
      _
    // Predicated region
    $region10: #{tpu_custom_call.1} parent=1 // pred_check
      _
    $region11: #{tpu_custom_call.1} parent=1 // pred_check_branch
      %33 = sbr.rel (0) target = $region13
    $region12: #{tpu_custom_call.1} parent=1 // pred_region
      %34 = dma.done [#allocation3], 128
    $region13: #{tpu_custom_call.1} parent=1 // pred_fallthru
      _
    // Predicated region
    $region14: #{tpu_custom_call.1} parent=1 // pred_check
      _
    $region15: #{tpu_custom_call.1} parent=1 // pred_check_branch
      %36 = sbr.rel (0) target = $region17
    $region16: #{tpu_custom_call.1} parent=1 // pred_region
      %37 = dma.done [#allocation6], 4736
    $region17: #{tpu_custom_call.1} parent=1 // pred_fallthru
      _
    %v38 = vld [vmem:[#allocation2] sm:$0xff]
    %v39 = vld [vmem:[#allocation5] sm:$0xff]
    %v40 = vld [vmem:[#allocation5 + $0x8] sm:$0xff]
    %v41 = vld [vmem:[#allocation5 + $0x10] sm:$0xff]
    %v42 = vld [vmem:[#allocation5 + $0x18] sm:$0xff]
    %v43 = vld [vmem:[#allocation5 + $0x20] sm:$0xff]
    %v44 = vld [vmem:[#allocation5 + $0x28] sm:$0xff]
    %v45 = vld [vmem:[#allocation5 + $0x30] sm:$0xff]
    %v46 = vld [vmem:[#allocation5 + $0x38] sm:$0xff]
    %v47 = vld [vmem:[#allocation5 + $0x40] sm:$0xff]
    %v48 = vld [vmem:[#allocation5 + $0x48] sm:$0xff]
    %v49 = vld [vmem:[#allocation5 + $0x50] sm:$0xff]
    %v50 = vld [vmem:[#allocation5 + $0x58] sm:$0xff]
    %v51 = vld [vmem:[#allocation5 + $0x60] sm:$0xff]
    %v52 = vld [vmem:[#allocation5 + $0x68] sm:$0xff]
    %v53 = vld [vmem:[#allocation5 + $0x70] sm:$0xff]
    %v54 = vld [vmem:[#allocation5 + $0x78] sm:$0xff]
    %v55 = vld [vmem:[#allocation5 + $0x80] sm:$0xff]
    %v56 = vld [vmem:[#allocation5 + $0x88] sm:$0xff]
    %v57 = vld [vmem:[#allocation5 + $0x90] sm:$0xff]
    %v58 = vld [vmem:[#allocation5 + $0x98] sm:$0xff]
    %v59 = vld [vmem:[#allocation5 + $0xa0] sm:$0xff]
    %v60 = vld [vmem:[#allocation5 + $0xa8] sm:$0xff]
    %v61 = vld [vmem:[#allocation5 + $0xb0] sm:$0xff]
    %v62 = vld [vmem:[#allocation5 + $0xb8] sm:$0xff]
    %v63 = vld [vmem:[#allocation5 + $0xc0] sm:$0xff]
    %v64 = vld [vmem:[#allocation5 + $0xc8] sm:$0xff]
    %v65 = vld [vmem:[#allocation5 + $0xd0] sm:$0xff]
    %v66 = vld [vmem:[#allocation5 + $0xd8] sm:$0xff]
    %v67 = vld [vmem:[#allocation5 + $0xe0] sm:$0xff]
    %v68 = vld [vmem:[#allocation5 + $0xe8] sm:$0xff]
    %v69 = vld [vmem:[#allocation5 + $0xf0] sm:$0xff]
    %v70 = vld [vmem:[#allocation5 + $0xf8] sm:$0xff]
    %v71 = vld [vmem:[#allocation5 + $0x100] sm:$0xff]
    %v72 = vld [vmem:[#allocation5 + $0x108] sm:$0xff]
    %v73 = vld [vmem:[#allocation5 + $0x110] sm:$0xff]
    %v74 = vld [vmem:[#allocation5 + $0x118] sm:$0xff]
    %v75 = vld [vmem:[#allocation5 + $0x120] sm:$0xff]
    %v76 = vlaneseq
    %v77 = vshrl.u32 %v76, 7
    %v78 = vsub.s32 0, %v77
    %v79 = vrot.slane %v75, %v78
    %vm80 = vcmask 261120
    %v82 = vsel %vm80, %v38, 0
    %84 = vmatprep.subr.mxu0 0.0
    %v85 = vand.u32 %v39, 4294901760
    %86 = vmatpush1.msra.mxu0 %v85
    %87 = vmatprep.subr.mxu0 0.0
    %v88 = vand.u32 %v40, 4294901760
    %89 = vmatpush1.msra.mxu0 %v88
    %90 = vmatprep.subr.mxu0 0.0
    %v91 = vand.u32 %v41, 4294901760
    %92 = vmatpush1.msra.mxu0 %v91
    %93 = vmatprep.subr.mxu0 0.0
    %v94 = vand.u32 %v42, 4294901760
    %95 = vmatpush1.msra.mxu0 %v94
    %96 = vmatprep.subr.mxu0 0.0
    %97 = vmatpush1.msra.mxu0 0.0
    %98 = vmatprep.subr.mxu0 0.0
    %99 = vmatpush1.msra.mxu0 0.0
    %100 = vmatprep.subr.mxu0 0.0
    %101 = vmatpush1.msra.mxu0 0.0
    %102 = vmatprep.subr.mxu0 0.0
    %103 = vmatpush1.msra.mxu0 0.0
    %104 = vmatprep.subr.mxu0 0.0
    %105 = vmatpush1.msra.mxu0 0.0
    %106 = vmatprep.subr.mxu0 0.0
    %107 = vmatpush1.msra.mxu0 0.0
    %108 = vmatprep.subr.mxu0 0.0
    %109 = vmatpush1.msra.mxu0 0.0
    %110 = vmatprep.subr.mxu0 0.0
    %111 = vmatpush1.msra.mxu0 0.0
    %112 = vmatprep.subr.mxu0 0.0
    %113 = vmatpush1.msra.mxu0 0.0
    %114 = vmatprep.subr.mxu0 0.0
    %115 = vmatpush1.msra.mxu0 0.0
    %116 = vmatprep.subr.mxu0 0.0
    %117 = vmatpush1.msra.mxu0 0.0
    %118 = vmatprep.subr.mxu0 0.0
    %119 = vmatpush1.msra.mxu0 0.0
    %120 = vmatprep.subr.mxu0 0.0
    %121 = vmatpush1.msra.mxu0 0.0
    %122 = vmatprep.subr.mxu0 0.0
    %123 = vmatpush1.msra.mxu0 0.0
    %124 = vmatprep.subr.mxu0 0.0
    %125 = vmatpush1.msra.mxu0 0.0
    %126 = vmatprep.subr.mxu0 0.0
    %127 = vmatpush1.msra.mxu0 0.0
    %128 = vmatprep.subr.mxu0 0.0
    %129 = vmatpush1.msra.mxu0 0.0
    %130 = vmatprep.subr.mxu0 0.0
    %131 = vmatpush1.msra.mxu0 0.0
    %132 = vmatprep.subr.mxu0 0.0
    %133 = vmatpush1.msra.mxu0 0.0
    %134 = vmatprep.subr.mxu0 0.0
    %135 = vmatpush1.msra.mxu0 0.0
    %136 = vmatprep.subr.mxu0 0.0
    %137 = vmatpush1.msra.mxu0 0.0
    %138 = vmatprep.subr.mxu0 0.0
    %139 = vmatpush1.msra.mxu0 0.0
    %140 = vmatprep.subr.mxu0 0.0
    %141 = vmatpush1.msra.mxu0 0.0
    %142 = vmatprep.subr.mxu0 0.0
    %143 = vmatpush1.msra.mxu0 0.0
    %144 = vmatprep.subr.mxu0 0.0
    %145 = vmatpush1.msra.mxu0 0.0
    %146 = vmatprep.subr.mxu0 0.0
    %147 = vmatpush1.msra.mxu0 0.0
    %148 = vmatprep.subr.mxu0 0.0
    %149 = vmatpush1.msra.mxu0 0.0
    %150 = vmatprep.subr.mxu0 0.0
    %151 = vmatpush1.msra.mxu0 0.0
    %152 = vmatprep.mubr.f32.mxu0 0.0
    %v153 = vand.u32 %v82, 4294901760
    %v154 = vsub.f32 %v82, %v153
    %v155 = vand.u32 %v154, 4294901760
    %v156 = vsub.f32 %v154, %v155
    %v157 = vand.u32 %v156, 4294901760
    %158 = vmatmul.mubr.f32.gmra.mrb[0].mxu0 %v157
    %v159 = vpop.f32.mrb[0].mxu0
    %v160 = vadd.f32 %v79, %v159
    %v161 = vpop.f32.mrb[0].mxu0
    %162 = vdwg.mxu0
    %163 = vmatprep.subr.mxu0 0.0
    %v164 = vand.u32 %v39, 4294901760
    %v165 = vsub.f32 %v39, %v164
    %v166 = vand.u32 %v165, 4294901760
    %v167 = vsub.f32 %v165, %v166
    %v168 = vand.u32 %v167, 4294901760
    %169 = vmatpush1.msra.mxu0 %v168
    %170 = vmatprep.subr.mxu0 0.0
    %v171 = vand.u32 %v40, 4294901760
    %v172 = vsub.f32 %v40, %v171
    %v173 = vand.u32 %v172, 4294901760
    %v174 = vsub.f32 %v172, %v173
    %v175 = vand.u32 %v174, 4294901760
    %176 = vmatpush1.msra.mxu0 %v175
    %177 = vmatprep.subr.mxu0 0.0
    %v178 = vand.u32 %v41, 4294901760
    %v179 = vsub.f32 %v41, %v178
    %v180 = vand.u32 %v179, 4294901760
    %v181 = vsub.f32 %v179, %v180
    %v182 = vand.u32 %v181, 4294901760
    %183 = vmatpush1.msra.mxu0 %v182
    %184 = vmatprep.subr.mxu0 0.0
    %v185 = vand.u32 %v42, 4294901760
    %v186 = vsub.f32 %v42, %v185
    %v187 = vand.u32 %v186, 4294901760
    %v188 = vsub.f32 %v186, %v187
    %v189 = vand.u32 %v188, 4294901760
    %190 = vmatpush1.msra.mxu0 %v189
    %191 = vmatprep.subr.mxu0 0.0
    %192 = vmatpush1.msra.mxu0 0.0
    %193 = vmatprep.subr.mxu0 0.0
    %194 = vmatpush1.msra.mxu0 0.0
    %195 = vmatprep.subr.mxu0 0.0
    %196 = vmatpush1.msra.mxu0 0.0
    %197 = vmatprep.subr.mxu0 0.0
    %198 = vmatpush1.msra.mxu0 0.0
    %199 = vmatprep.subr.mxu0 0.0
    %200 = vmatpush1.msra.mxu0 0.0
    %201 = vmatprep.subr.mxu0 0.0
    %202 = vmatpush1.msra.mxu0 0.0
    %203 = vmatprep.subr.mxu0 0.0
    %204 = vmatpush1.msra.mxu0 0.0
    %205 = vmatprep.subr.mxu0 0.0
    %206 = vmatpush1.msra.mxu0 0.0
    %207 = vmatprep.subr.mxu0 0.0
    %208 = vmatpush1.msra.mxu0 0.0
    %209 = vmatprep.subr.mxu0 0.0
    %210 = vmatpush1.msra.mxu0 0.0
    %211 = vmatprep.subr.mxu0 0.0
    %212 = vmatpush1.msra.mxu0 0.0
    %213 = vmatprep.subr.mxu0 0.0
    %214 = vmatpush1.msra.mxu0 0.0
    %215 = vmatprep.subr.mxu0 0.0
    %216 = vmatpush1.msra.mxu0 0.0
    %217 = vmatprep.subr.mxu0 0.0
    %218 = vmatpush1.msra.mxu0 0.0
    %219 = vmatprep.subr.mxu0 0.0
    %220 = vmatpush1.msra.mxu0 0.0
    %221 = vmatprep.subr.mxu0 0.0
    %222 = vmatpush1.msra.mxu0 0.0
    %223 = vmatprep.subr.mxu0 0.0
    %224 = vmatpush1.msra.mxu0 0.0
    %225 = vmatprep.subr.mxu0 0.0
    %226 = vmatpush1.msra.mxu0 0.0
    %227 = vmatprep.subr.mxu0 0.0
    %228 = vmatpush1.msra.mxu0 0.0
    %229 = vmatprep.subr.mxu0 0.0
    %230 = vmatpush1.msra.mxu0 0.0
    %231 = vmatprep.subr.mxu0 0.0
    %232 = vmatpush1.msra.mxu0 0.0
    %233 = vmatprep.subr.mxu0 0.0
    %234 = vmatpush1.msra.mxu0 0.0
    %235 = vmatprep.subr.mxu0 0.0
    %236 = vmatpush1.msra.mxu0 0.0
    %237 = vmatprep.subr.mxu0 0.0
    %238 = vmatpush1.msra.mxu0 0.0
    %239 = vmatprep.subr.mxu0 0.0
    %240 = vmatpush1.msra.mxu0 0.0
    %241 = vmatprep.subr.mxu0 0.0
    %242 = vmatpush1.msra.mxu0 0.0
    %243 = vmatprep.subr.mxu0 0.0
    %244 = vmatpush1.msra.mxu0 0.0
    %245 = vmatprep.subr.mxu0 0.0
    %246 = vmatpush1.msra.mxu0 0.0
    %247 = vmatprep.mubr.f32.mxu0 0.0
    %v248 = vand.u32 %v82, 4294901760
    %249 = vmatmul.mubr.f32.gmra.mrb[0].mxu0 %v248
    %v250 = vpop.f32.mrb[0].mxu0
    %v251 = vadd.f32 %v160, %v250
    %v252 = vpop.f32.mrb[0].mxu0
    %253 = vdwg.mxu0
    %254 = vmatprep.subr.mxu0 0.0
    %v255 = vand.u32 %v39, 4294901760
    %v256 = vsub.f32 %v39, %v255
    %257 = vmatpush1.msra.mxu0 %v256
    %258 = vmatprep.subr.mxu0 0.0
    %v259 = vand.u32 %v40, 4294901760
    %v260 = vsub.f32 %v40, %v259
    %261 = vmatpush1.msra.mxu0 %v260
    %262 = vmatprep.subr.mxu0 0.0
    %v263 = vand.u32 %v41, 4294901760
    %v264 = vsub.f32 %v41, %v263
    %265 = vmatpush1.msra.mxu0 %v264
    %266 = vmatprep.subr.mxu0 0.0
    %v267 = vand.u32 %v42, 4294901760
    %v268 = vsub.f32 %v42, %v267
    %269 = vmatpush1.msra.mxu0 %v268
    %270 = vmatprep.subr.mxu0 0.0
    %271 = vmatpush1.msra.mxu0 0.0
    %272 = vmatprep.subr.mxu0 0.0
    %273 = vmatpush1.msra.mxu0 0.0
    %274 = vmatprep.subr.mxu0 0.0
    %275 = vmatpush1.msra.mxu0 0.0
    %276 = vmatprep.subr.mxu0 0.0
    %277 = vmatpush1.msra.mxu0 0.0
    %278 = vmatprep.subr.mxu0 0.0
    %279 = vmatpush1.msra.mxu0 0.0
    %280 = vmatprep.subr.mxu0 0.0
    %281 = vmatpush1.msra.mxu0 0.0
    %282 = vmatprep.subr.mxu0 0.0
    %283 = vmatpush1.msra.mxu0 0.0
    %284 = vmatprep.subr.mxu0 0.0
    %285 = vmatpush1.msra.mxu0 0.0
    %286 = vmatprep.subr.mxu0 0.0
    %287 = vmatpush1.msra.mxu0 0.0
    %288 = vmatprep.subr.mxu0 0.0
    %289 = vmatpush1.msra.mxu0 0.0
    %290 = vmatprep.subr.mxu0 0.0
    %291 = vmatpush1.msra.mxu0 0.0
    %292 = vmatprep.subr.mxu0 0.0
    %293 = vmatpush1.msra.mxu0 0.0
    %294 = vmatprep.subr.mxu0 0.0
    %295 = vmatpush1.msra.mxu0 0.0
    %296 = vmatprep.subr.mxu0 0.0
    %297 = vmatpush1.msra.mxu0 0.0
    %298 = vmatprep.subr.mxu0 0.0
    %299 = vmatpush1.msra.mxu0 0.0
    %300 = vmatprep.subr.mxu0 0.0
    %301 = vmatpush1.msra.mxu0 0.0
    %302 = vmatprep.subr.mxu0 0.0
    %303 = vmatpush1.msra.mxu0 0.0
    %304 = vmatprep.subr.mxu0 0.0
    %305 = vmatpush1.msra.mxu0 0.0
    %306 = vmatprep.subr.mxu0 0.0
    %307 = vmatpush1.msra.mxu0 0.0
    %308 = vmatprep.subr.mxu0 0.0
    %309 = vmatpush1.msra.mxu0 0.0
    %310 = vmatprep.subr.mxu0 0.0
    %311 = vmatpush1.msra.mxu0 0.0
    %312 = vmatprep.subr.mxu0 0.0
    %313 = vmatpush1.msra.mxu0 0.0
    %314 = vmatprep.subr.mxu0 0.0
    %315 = vmatpush1.msra.mxu0 0.0
    %316 = vmatprep.subr.mxu0 0.0
    %317 = vmatpush1.msra.mxu0 0.0
    %318 = vmatprep.subr.mxu0 0.0
    %319 = vmatpush1.msra.mxu0 0.0
    %320 = vmatprep.subr.mxu0 0.0
    %321 = vmatpush1.msra.mxu0 0.0
    %322 = vmatprep.subr.mxu0 0.0
    %323 = vmatpush1.msra.mxu0 0.0
    %324 = vmatprep.subr.mxu0 0.0
    %325 = vmatpush1.msra.mxu0 0.0
    %326 = vmatprep.mubr.f32.mxu0 0.0
    %v327 = vand.u32 %v82, 4294901760
    %v328 = vsub.f32 %v82, %v327
    %329 = vmatmul.mubr.f32.gmra.mrb[0].mxu0 %v328
    %v330 = vpop.f32.mrb[0].mxu0
    %v331 = vadd.f32 %v251, %v330
    %v332 = vpop.f32.mrb[0].mxu0
    %333 = vdwg.mxu0
    %334 = vmatprep.subr.mxu0 0.0
    %v335 = vand.u32 %v39, 4294901760
    %336 = vmatpush1.msra.mxu0 %v335
    %337 = vmatprep.subr.mxu0 0.0
    %v338 = vand.u32 %v40, 4294901760
    %339 = vmatpush1.msra.mxu0 %v338
    %340 = vmatprep.subr.mxu0 0.0
    %v341 = vand.u32 %v41, 4294901760
    %342 = vmatpush1.msra.mxu0 %v341
    %343 = vmatprep.subr.mxu0 0.0
    %v344 = vand.u32 %v42, 4294901760
    %345 = vmatpush1.msra.mxu0 %v344
    %346 = vmatprep.subr.mxu0 0.0
    %347 = vmatpush1.msra.mxu0 0.0
    %348 = vmatprep.subr.mxu0 0.0
    %349 = vmatpush1.msra.mxu0 0.0
    %350 = vmatprep.subr.mxu0 0.0
    %351 = vmatpush1.msra.mxu0 0.0
    %352 = vmatprep.subr.mxu0 0.0
    %353 = vmatpush1.msra.mxu0 0.0
    %354 = vmatprep.subr.mxu0 0.0
    %355 = vmatpush1.msra.mxu0 0.0
    %356 = vmatprep.subr.mxu0 0.0
    %357 = vmatpush1.msra.mxu0 0.0
    %358 = vmatprep.subr.mxu0 0.0
    %359 = vmatpush1.msra.mxu0 0.0
    %360 = vmatprep.subr.mxu0 0.0
    %361 = vmatpush1.msra.mxu0 0.0
    %362 = vmatprep.subr.mxu0 0.0
    %363 = vmatpush1.msra.mxu0 0.0
    %364 = vmatprep.subr.mxu0 0.0
    %365 = vmatpush1.msra.mxu0 0.0
    %366 = vmatprep.subr.mxu0 0.0
    %367 = vmatpush1.msra.mxu0 0.0
    %368 = vmatprep.subr.mxu0 0.0
    %369 = vmatpush1.msra.mxu0 0.0
    %370 = vmatprep.subr.mxu0 0.0
    %371 = vmatpush1.msra.mxu0 0.0
    %372 = vmatprep.subr.mxu0 0.0
    %373 = vmatpush1.msra.mxu0 0.0
    %374 = vmatprep.subr.mxu0 0.0
    %375 = vmatpush1.msra.mxu0 0.0
    %376 = vmatprep.subr.mxu0 0.0
    %377 = vmatpush1.msra.mxu0 0.0
    %378 = vmatprep.subr.mxu0 0.0
    %379 = vmatpush1.msra.mxu0 0.0
    %380 = vmatprep.subr.mxu0 0.0
    %381 = vmatpush1.msra.mxu0 0.0
    %382 = vmatprep.subr.mxu0 0.0
    %383 = vmatpush1.msra.mxu0 0.0
    %384 = vmatprep.subr.mxu0 0.0
    %385 = vmatpush1.msra.mxu0 0.0
    %386 = vmatprep.subr.mxu0 0.0
    %387 = vmatpush1.msra.mxu0 0.0
    %388 = vmatprep.subr.mxu0 0.0
    %389 = vmatpush1.msra.mxu0 0.0
    %390 = vmatprep.subr.mxu0 0.0
    %391 = vmatpush1.msra.mxu0 0.0
    %392 = vmatprep.subr.mxu0 0.0
    %393 = vmatpush1.msra.mxu0 0.0
    %394 = vmatprep.subr.mxu0 0.0
    %395 = vmatpush1.msra.mxu0 0.0
    %396 = vmatprep.subr.mxu0 0.0
    %397 = vmatpush1.msra.mxu0 0.0
    %398 = vmatprep.subr.mxu0 0.0
    %399 = vmatpush1.msra.mxu0 0.0
    %400 = vmatprep.subr.mxu0 0.0
    %401 = vmatpush1.msra.mxu0 0.0
    %402 = vmatprep.mubr.f32.mxu0 0.0
    %v403 = vand.u32 %v82, 4294901760
    %v404 = vsub.f32 %v82, %v403
    %v405 = vand.u32 %v404, 4294901760
    %406 = vmatmul.mubr.f32.gmra.mrb[0].mxu0 %v405
    %v407 = vpop.f32.mrb[0].mxu0
    %v408 = vadd.f32 %v331, %v407
    %v409 = vpop.f32.mrb[0].mxu0
    %410 = vdwg.mxu0
    %411 = vmatprep.subr.mxu0 0.0
    %v412 = vand.u32 %v39, 4294901760
    %v413 = vsub.f32 %v39, %v412
    %v414 = vand.u32 %v413, 4294901760
    %415 = vmatpush1.msra.mxu0 %v414
    %416 = vmatprep.subr.mxu0 0.0
    %v417 = vand.u32 %v40, 4294901760
    %v418 = vsub.f32 %v40, %v417
    %v419 = vand.u32 %v418, 4294901760
    %420 = vmatpush1.msra.mxu0 %v419
    %421 = vmatprep.subr.mxu0 0.0
    %v422 = vand.u32 %v41, 4294901760
    %v423 = vsub.f32 %v41, %v422
    %v424 = vand.u32 %v423, 4294901760
    %425 = vmatpush1.msra.mxu0 %v424
    %426 = vmatprep.subr.mxu0 0.0
    %v427 = vand.u32 %v42, 4294901760
    %v428 = vsub.f32 %v42, %v427
    %v429 = vand.u32 %v428, 4294901760
    %430 = vmatpush1.msra.mxu0 %v429
    %431 = vmatprep.subr.mxu0 0.0
    %432 = vmatpush1.msra.mxu0 0.0
    %433 = vmatprep.subr.mxu0 0.0
    %434 = vmatpush1.msra.mxu0 0.0
    %435 = vmatprep.subr.mxu0 0.0
    %436 = vmatpush1.msra.mxu0 0.0
    %437 = vmatprep.subr.mxu0 0.0
    %438 = vmatpush1.msra.mxu0 0.0
    %439 = vmatprep.subr.mxu0 0.0
    %440 = vmatpush1.msra.mxu0 0.0
    %441 = vmatprep.subr.mxu0 0.0
    %442 = vmatpush1.msra.mxu0 0.0
    %443 = vmatprep.subr.mxu0 0.0
    %444 = vmatpush1.msra.mxu0 0.0
    %445 = vmatprep.subr.mxu0 0.0
    %446 = vmatpush1.msra.mxu0 0.0
    %447 = vmatprep.subr.mxu0 0.0
    %448 = vmatpush1.msra.mxu0 0.0
    %449 = vmatprep.subr.mxu0 0.0
    %450 = vmatpush1.msra.mxu0 0.0
    %451 = vmatprep.subr.mxu0 0.0
    %452 = vmatpush1.msra.mxu0 0.0
    %453 = vmatprep.subr.mxu0 0.0
    %454 = vmatpush1.msra.mxu0 0.0
    %455 = vmatprep.subr.mxu0 0.0
    %456 = vmatpush1.msra.mxu0 0.0
    %457 = vmatprep.subr.mxu0 0.0
    %458 = vmatpush1.msra.mxu0 0.0
    %459 = vmatprep.subr.mxu0 0.0
    %460 = vmatpush1.msra.mxu0 0.0
    %461 = vmatprep.subr.mxu0 0.0
    %462 = vmatpush1.msra.mxu0 0.0
    %463 = vmatprep.subr.mxu0 0.0
    %464 = vmatpush1.msra.mxu0 0.0
    %465 = vmatprep.subr.mxu0 0.0
    %466 = vmatpush1.msra.mxu0 0.0
    %467 = vmatprep.subr.mxu0 0.0
    %468 = vmatpush1.msra.mxu0 0.0
    %469 = vmatprep.subr.mxu0 0.0
    %470 = vmatpush1.msra.mxu0 0.0
    %471 = vmatprep.subr.mxu0 0.0
    %472 = vmatpush1.msra.mxu0 0.0
    %473 = vmatprep.subr.mxu0 0.0
    %474 = vmatpush1.msra.mxu0 0.0
    %475 = vmatprep.subr.mxu0 0.0
    %476 = vmatpush1.msra.mxu0 0.0
    %477 = vmatprep.subr.mxu0 0.0
    %478 = vmatpush1.msra.mxu0 0.0
    %479 = vmatprep.subr.mxu0 0.0
    %480 = vmatpush1.msra.mxu0 0.0
    %481 = vmatprep.subr.mxu0 0.0
    %482 = vmatpush1.msra.mxu0 0.0
    %483 = vmatprep.subr.mxu0 0.0
    %484 = vmatpush1.msra.mxu0 0.0
    %485 = vmatprep.subr.mxu0 0.0
    %486 = vmatpush1.msra.mxu0 0.0
    %487 = vmatprep.mubr.f32.mxu0 0.0
    %v488 = vand.u32 %v82, 4294901760
    %489 = vmatmul.mubr.f32.gmra.mrb[0].mxu0 %v488
    %v490 = vpop.f32.mrb[0].mxu0
    %v491 = vadd.f32 %v408, %v490
    %v492 = vpop.f32.mrb[0].mxu0
    %493 = vdwg.mxu0
    %494 = vmatprep.subr.mxu0 0.0
    %v495 = vand.u32 %v39, 4294901760
    %496 = vmatpush1.msra.mxu0 %v495
    %497 = vmatprep.subr.mxu0 0.0
    %v498 = vand.u32 %v40, 4294901760
    %499 = vmatpush1.msra.mxu0 %v498
    %500 = vmatprep.subr.mxu0 0.0
    %v501 = vand.u32 %v41, 4294901760
    %502 = vmatpush1.msra.mxu0 %v501
    %503 = vmatprep.subr.mxu0 0.0
    %v504 = vand.u32 %v42, 4294901760
    %505 = vmatpush1.msra.mxu0 %v504
    %506 = vmatprep.subr.mxu0 0.0
    %507 = vmatpush1.msra.mxu0 0.0
    %508 = vmatprep.subr.mxu0 0.0
    %509 = vmatpush1.msra.mxu0 0.0
    %510 = vmatprep.subr.mxu0 0.0
    %511 = vmatpush1.msra.mxu0 0.0
    %512 = vmatprep.subr.mxu0 0.0
    %513 = vmatpush1.msra.mxu0 0.0
    %514 = vmatprep.subr.mxu0 0.0
    %515 = vmatpush1.msra.mxu0 0.0
    %516 = vmatprep.subr.mxu0 0.0
    %517 = vmatpush1.msra.mxu0 0.0
    %518 = vmatprep.subr.mxu0 0.0
    %519 = vmatpush1.msra.mxu0 0.0
    %520 = vmatprep.subr.mxu0 0.0
    %521 = vmatpush1.msra.mxu0 0.0
    %522 = vmatprep.subr.mxu0 0.0
    %523 = vmatpush1.msra.mxu0 0.0
    %524 = vmatprep.subr.mxu0 0.0
    %525 = vmatpush1.msra.mxu0 0.0
    %526 = vmatprep.subr.mxu0 0.0
    %527 = vmatpush1.msra.mxu0 0.0
    %528 = vmatprep.subr.mxu0 0.0
    %529 = vmatpush1.msra.mxu0 0.0
    %530 = vmatprep.subr.mxu0 0.0
    %531 = vmatpush1.msra.mxu0 0.0
    %532 = vmatprep.subr.mxu0 0.0
    %533 = vmatpush1.msra.mxu0 0.0
    %534 = vmatprep.subr.mxu0 0.0
    %535 = vmatpush1.msra.mxu0 0.0
    %536 = vmatprep.subr.mxu0 0.0
    %537 = vmatpush1.msra.mxu0 0.0
    %538 = vmatprep.subr.mxu0 0.0
    %539 = vmatpush1.msra.mxu0 0.0
    %540 = vmatprep.subr.mxu0 0.0
    %541 = vmatpush1.msra.mxu0 0.0
    %542 = vmatprep.subr.mxu0 0.0
    %543 = vmatpush1.msra.mxu0 0.0
    %544 = vmatprep.subr.mxu0 0.0
    %545 = vmatpush1.msra.mxu0 0.0
    %546 = vmatprep.subr.mxu0 0.0
    %547 = vmatpush1.msra.mxu0 0.0
    %548 = vmatprep.subr.mxu0 0.0
    %549 = vmatpush1.msra.mxu0 0.0
    %550 = vmatprep.subr.mxu0 0.0
    %551 = vmatpush1.msra.mxu0 0.0
    %552 = vmatprep.subr.mxu0 0.0
    %553 = vmatpush1.msra.mxu0 0.0
    %554 = vmatprep.subr.mxu0 0.0
    %555 = vmatpush1.msra.mxu0 0.0
    %556 = vmatprep.subr.mxu0 0.0
    %557 = vmatpush1.msra.mxu0 0.0
    %558 = vmatprep.subr.mxu0 0.0
    %559 = vmatpush1.msra.mxu0 0.0
    %560 = vmatprep.subr.mxu0 0.0
    %561 = vmatpush1.msra.mxu0 0.0
    %562 = vmatprep.mubr.f32.mxu0 0.0
    %v563 = vand.u32 %v82, 4294901760
    %564 = vmatmul.mubr.f32.gmra.mrb[0].mxu0 %v563
    %v565 = vpop.f32.mrb[0].mxu0
    %v566 = vadd.f32 %v491, %v565
    %v567 = vpop.f32.mrb[0].mxu0
    %568 = vdwg.mxu0
    %v569 = vmax.f32 %v566, 0.0
    %v570 = vlaneseq
    %v571 = vshrl.u32 %v570, 7
    %v572 = vsub.s32 1, %v571
    %v573 = vrot.slane %v75, %v572
    %574 = vmatprep.subr.mxu0 0.0
    %v575 = vand.u32 %v43, 4294901760
    %576 = vmatpush1.msra.mxu0 %v575
    %577 = vmatprep.subr.mxu0 0.0
    %v578 = vand.u32 %v44, 4294901760
    %579 = vmatpush1.msra.mxu0 %v578
    %580 = vmatprep.subr.mxu0 0.0
    %v581 = vand.u32 %v45, 4294901760
    %582 = vmatpush1.msra.mxu0 %v581
    %583 = vmatprep.subr.mxu0 0.0
    %v584 = vand.u32 %v46, 4294901760
    %585 = vmatpush1.msra.mxu0 %v584
    %586 = vmatprep.subr.mxu0 0.0
    %v587 = vand.u32 %v47, 4294901760
    %588 = vmatpush1.msra.mxu0 %v587
    %589 = vmatprep.subr.mxu0 0.0
    %v590 = vand.u32 %v48, 4294901760
    %591 = vmatpush1.msra.mxu0 %v590
    %592 = vmatprep.subr.mxu0 0.0
    %v593 = vand.u32 %v49, 4294901760
    %594 = vmatpush1.msra.mxu0 %v593
    %595 = vmatprep.subr.mxu0 0.0
    %v596 = vand.u32 %v50, 4294901760
    %597 = vmatpush1.msra.mxu0 %v596
    %598 = vmatprep.subr.mxu0 0.0
    %v599 = vand.u32 %v51, 4294901760
    %600 = vmatpush1.msra.mxu0 %v599
    %601 = vmatprep.subr.mxu0 0.0
    %v602 = vand.u32 %v52, 4294901760
    %603 = vmatpush1.msra.mxu0 %v602
    %604 = vmatprep.subr.mxu0 0.0
    %v605 = vand.u32 %v53, 4294901760
    %606 = vmatpush1.msra.mxu0 %v605
    %607 = vmatprep.subr.mxu0 0.0
    %v608 = vand.u32 %v54, 4294901760
    %609 = vmatpush1.msra.mxu0 %v608
    %610 = vmatprep.subr.mxu0 0.0
    %v611 = vand.u32 %v55, 4294901760
    %612 = vmatpush1.msra.mxu0 %v611
    %613 = vmatprep.subr.mxu0 0.0
    %v614 = vand.u32 %v56, 4294901760
    %615 = vmatpush1.msra.mxu0 %v614
    %616 = vmatprep.subr.mxu0 0.0
    %v617 = vand.u32 %v57, 4294901760
    %618 = vmatpush1.msra.mxu0 %v617
    %619 = vmatprep.subr.mxu0 0.0
    %v620 = vand.u32 %v58, 4294901760
    %621 = vmatpush1.msra.mxu0 %v620
    %622 = vmatprep.subr.mxu0 0.0
    %623 = vmatpush1.msra.mxu0 0.0
    %624 = vmatprep.subr.mxu0 0.0
    %625 = vmatpush1.msra.mxu0 0.0
    %626 = vmatprep.subr.mxu0 0.0
    %627 = vmatpush1.msra.mxu0 0.0
    %628 = vmatprep.subr.mxu0 0.0
    %629 = vmatpush1.msra.mxu0 0.0
    %630 = vmatprep.subr.mxu0 0.0
    %631 = vmatpush1.msra.mxu0 0.0
    %632 = vmatprep.subr.mxu0 0.0
    %633 = vmatpush1.msra.mxu0 0.0
    %634 = vmatprep.subr.mxu0 0.0
    %635 = vmatpush1.msra.mxu0 0.0
    %636 = vmatprep.subr.mxu0 0.0
    %637 = vmatpush1.msra.mxu0 0.0
    %638 = vmatprep.subr.mxu0 0.0
    %639 = vmatpush1.msra.mxu0 0.0
    %640 = vmatprep.subr.mxu0 0.0
    %641 = vmatpush1.msra.mxu0 0.0
    %642 = vmatprep.subr.mxu0 0.0
    %643 = vmatpush1.msra.mxu0 0.0
    %644 = vmatprep.subr.mxu0 0.0
    %645 = vmatpush1.msra.mxu0 0.0
    %646 = vmatprep.subr.mxu0 0.0
    %647 = vmatpush1.msra.mxu0 0.0
    %648 = vmatprep.subr.mxu0 0.0
    %649 = vmatpush1.msra.mxu0 0.0
    %650 = vmatprep.subr.mxu0 0.0
    %651 = vmatpush1.msra.mxu0 0.0
    %652 = vmatprep.subr.mxu0 0.0
    %653 = vmatpush1.msra.mxu0 0.0
    %654 = vmatprep.mubr.f32.mxu0 0.0
    %v655 = vand.u32 %v569, 4294901760
    %v656 = vsub.f32 %v569, %v655
    %v657 = vand.u32 %v656, 4294901760
    %v658 = vsub.f32 %v656, %v657
    %v659 = vand.u32 %v658, 4294901760
    %660 = vmatmul.mubr.f32.gmra.mrb[0].mxu0 %v659
    %v661 = vpop.f32.mrb[0].mxu0
    %v662 = vadd.f32 %v573, %v661
    %v663 = vpop.f32.mrb[0].mxu0
    %664 = vdwg.mxu0
    %665 = vmatprep.subr.mxu0 0.0
    %v666 = vand.u32 %v43, 4294901760
    %v667 = vsub.f32 %v43, %v666
    %v668 = vand.u32 %v667, 4294901760
    %v669 = vsub.f32 %v667, %v668
    %v670 = vand.u32 %v669, 4294901760
    %671 = vmatpush1.msra.mxu0 %v670
    %672 = vmatprep.subr.mxu0 0.0
    %v673 = vand.u32 %v44, 4294901760
    %v674 = vsub.f32 %v44, %v673
    %v675 = vand.u32 %v674, 4294901760
    %v676 = vsub.f32 %v674, %v675
    %v677 = vand.u32 %v676, 4294901760
    %678 = vmatpush1.msra.mxu0 %v677
    %679 = vmatprep.subr.mxu0 0.0
    %v680 = vand.u32 %v45, 4294901760
    %v681 = vsub.f32 %v45, %v680
    %v682 = vand.u32 %v681, 4294901760
    %v683 = vsub.f32 %v681, %v682
    %v684 = vand.u32 %v683, 4294901760
    %685 = vmatpush1.msra.mxu0 %v684
    %686 = vmatprep.subr.mxu0 0.0
    %v687 = vand.u32 %v46, 4294901760
    %v688 = vsub.f32 %v46, %v687
    %v689 = vand.u32 %v688, 4294901760
    %v690 = vsub.f32 %v688, %v689
    %v691 = vand.u32 %v690, 4294901760
    %692 = vmatpush1.msra.mxu0 %v691
    %693 = vmatprep.subr.mxu0 0.0
    %v694 = vand.u32 %v47, 4294901760
    %v695 = vsub.f32 %v47, %v694
    %v696 = vand.u32 %v695, 4294901760
    %v697 = vsub.f32 %v695, %v696
    %v698 = vand.u32 %v697, 4294901760
    %699 = vmatpush1.msra.mxu0 %v698
    %700 = vmatprep.subr.mxu0 0.0
    %v701 = vand.u32 %v48, 4294901760
    %v702 = vsub.f32 %v48, %v701
    %v703 = vand.u32 %v702, 4294901760
    %v704 = vsub.f32 %v702, %v703
    %v705 = vand.u32 %v704, 4294901760
    %706 = vmatpush1.msra.mxu0 %v705
    %707 = vmatprep.subr.mxu0 0.0
    %v708 = vand.u32 %v49, 4294901760
    %v709 = vsub.f32 %v49, %v708
    %v710 = vand.u32 %v709, 4294901760
    %v711 = vsub.f32 %v709, %v710
    %v712 = vand.u32 %v711, 4294901760
    %713 = vmatpush1.msra.mxu0 %v712
    %714 = vmatprep.subr.mxu0 0.0
    %v715 = vand.u32 %v50, 4294901760
    %v716 = vsub.f32 %v50, %v715
    %v717 = vand.u32 %v716, 4294901760
    %v718 = vsub.f32 %v716, %v717
    %v719 = vand.u32 %v718, 4294901760
    %720 = vmatpush1.msra.mxu0 %v719
    %721 = vmatprep.subr.mxu0 0.0
    %v722 = vand.u32 %v51, 4294901760
    %v723 = vsub.f32 %v51, %v722
    %v724 = vand.u32 %v723, 4294901760
    %v725 = vsub.f32 %v723, %v724
    %v726 = vand.u32 %v725, 4294901760
    %727 = vmatpush1.msra.mxu0 %v726
    %728 = vmatprep.subr.mxu0 0.0
    %v729 = vand.u32 %v52, 4294901760
    %v730 = vsub.f32 %v52, %v729
    %v731 = vand.u32 %v730, 4294901760
    %v732 = vsub.f32 %v730, %v731
    %v733 = vand.u32 %v732, 4294901760
    %734 = vmatpush1.msra.mxu0 %v733
    %735 = vmatprep.subr.mxu0 0.0
    %v736 = vand.u32 %v53, 4294901760
    %v737 = vsub.f32 %v53, %v736
    %v738 = vand.u32 %v737, 4294901760
    %v739 = vsub.f32 %v737, %v738
    %v740 = vand.u32 %v739, 4294901760
    %741 = vmatpush1.msra.mxu0 %v740
    %742 = vmatprep.subr.mxu0 0.0
    %v743 = vand.u32 %v54, 4294901760
    %v744 = vsub.f32 %v54, %v743
    %v745 = vand.u32 %v744, 4294901760
    %v746 = vsub.f32 %v744, %v745
    %v747 = vand.u32 %v746, 4294901760
    %748 = vmatpush1.msra.mxu0 %v747
    %749 = vmatprep.subr.mxu0 0.0
    %v750 = vand.u32 %v55, 4294901760
    %v751 = vsub.f32 %v55, %v750
    %v752 = vand.u32 %v751, 4294901760
    %v753 = vsub.f32 %v751, %v752
    %v754 = vand.u32 %v753, 4294901760
    %755 = vmatpush1.msra.mxu0 %v754
    %756 = vmatprep.subr.mxu0 0.0
    %v757 = vand.u32 %v56, 4294901760
    %v758 = vsub.f32 %v56, %v757
    %v759 = vand.u32 %v758, 4294901760
    %v760 = vsub.f32 %v758, %v759
    %v761 = vand.u32 %v760, 4294901760
    %762 = vmatpush1.msra.mxu0 %v761
    %763 = vmatprep.subr.mxu0 0.0
    %v764 = vand.u32 %v57, 4294901760
    %v765 = vsub.f32 %v57, %v764
    %v766 = vand.u32 %v765, 4294901760
    %v767 = vsub.f32 %v765, %v766
    %v768 = vand.u32 %v767, 4294901760
    %769 = vmatpush1.msra.mxu0 %v768
    %770 = vmatprep.subr.mxu0 0.0
    %v771 = vand.u32 %v58, 4294901760
    %v772 = vsub.f32 %v58, %v771
    %v773 = vand.u32 %v772, 4294901760
    %v774 = vsub.f32 %v772, %v773
    %v775 = vand.u32 %v774, 4294901760
    %776 = vmatpush1.msra.mxu0 %v775
    %777 = vmatprep.subr.mxu0 0.0
    %778 = vmatpush1.msra.mxu0 0.0
    %779 = vmatprep.subr.mxu0 0.0
    %780 = vmatpush1.msra.mxu0 0.0
    %781 = vmatprep.subr.mxu0 0.0
    %782 = vmatpush1.msra.mxu0 0.0
    %783 = vmatprep.subr.mxu0 0.0
    %784 = vmatpush1.msra.mxu0 0.0
    %785 = vmatprep.subr.mxu0 0.0
    %786 = vmatpush1.msra.mxu0 0.0
    %787 = vmatprep.subr.mxu0 0.0
    %788 = vmatpush1.msra.mxu0 0.0
    %789 = vmatprep.subr.mxu0 0.0
    %790 = vmatpush1.msra.mxu0 0.0
    %791 = vmatprep.subr.mxu0 0.0
    %792 = vmatpush1.msra.mxu0 0.0
    %793 = vmatprep.subr.mxu0 0.0
    %794 = vmatpush1.msra.mxu0 0.0
    %795 = vmatprep.subr.mxu0 0.0
    %796 = vmatpush1.msra.mxu0 0.0
    %797 = vmatprep.subr.mxu0 0.0
    %798 = vmatpush1.msra.mxu0 0.0
    %799 = vmatprep.subr.mxu0 0.0
    %800 = vmatpush1.msra.mxu0 0.0
    %801 = vmatprep.subr.mxu0 0.0
    %802 = vmatpush1.msra.mxu0 0.0
    %803 = vmatprep.subr.mxu0 0.0
    %804 = vmatpush1.msra.mxu0 0.0
    %805 = vmatprep.subr.mxu0 0.0
    %806 = vmatpush1.msra.mxu0 0.0
    %807 = vmatprep.subr.mxu0 0.0
    %808 = vmatpush1.msra.mxu0 0.0
    %809 = vmatprep.mubr.f32.mxu0 0.0
    %v810 = vand.u32 %v569, 4294901760
    %811 = vmatmul.mubr.f32.gmra.mrb[0].mxu0 %v810
    %v812 = vpop.f32.mrb[0].mxu0
    %v813 = vadd.f32 %v662, %v812
    %v814 = vpop.f32.mrb[0].mxu0
    %815 = vdwg.mxu0
    %816 = vmatprep.subr.mxu0 0.0
    %v817 = vand.u32 %v43, 4294901760
    %v818 = vsub.f32 %v43, %v817
    %819 = vmatpush1.msra.mxu0 %v818
    %820 = vmatprep.subr.mxu0 0.0
    %v821 = vand.u32 %v44, 4294901760
    %v822 = vsub.f32 %v44, %v821
    %823 = vmatpush1.msra.mxu0 %v822
    %824 = vmatprep.subr.mxu0 0.0
    %v825 = vand.u32 %v45, 4294901760
    %v826 = vsub.f32 %v45, %v825
    %827 = vmatpush1.msra.mxu0 %v826
    %828 = vmatprep.subr.mxu0 0.0
    %v829 = vand.u32 %v46, 4294901760
    %v830 = vsub.f32 %v46, %v829
    %831 = vmatpush1.msra.mxu0 %v830
    %832 = vmatprep.subr.mxu0 0.0
    %v833 = vand.u32 %v47, 4294901760
    %v834 = vsub.f32 %v47, %v833
    %835 = vmatpush1.msra.mxu0 %v834
    %836 = vmatprep.subr.mxu0 0.0
    %v837 = vand.u32 %v48, 4294901760
    %v838 = vsub.f32 %v48, %v837
    %839 = vmatpush1.msra.mxu0 %v838
    %840 = vmatprep.subr.mxu0 0.0
    %v841 = vand.u32 %v49, 4294901760
    %v842 = vsub.f32 %v49, %v841
    %843 = vmatpush1.msra.mxu0 %v842
    %844 = vmatprep.subr.mxu0 0.0
    %v845 = vand.u32 %v50, 4294901760
    %v846 = vsub.f32 %v50, %v845
    %847 = vmatpush1.msra.mxu0 %v846
    %848 = vmatprep.subr.mxu0 0.0
    %v849 = vand.u32 %v51, 4294901760
    %v850 = vsub.f32 %v51, %v849
    %851 = vmatpush1.msra.mxu0 %v850
    %852 = vmatprep.subr.mxu0 0.0
    %v853 = vand.u32 %v52, 4294901760
    %v854 = vsub.f32 %v52, %v853
    %855 = vmatpush1.msra.mxu0 %v854
    %856 = vmatprep.subr.mxu0 0.0
    %v857 = vand.u32 %v53, 4294901760
    %v858 = vsub.f32 %v53, %v857
    %859 = vmatpush1.msra.mxu0 %v858
    %860 = vmatprep.subr.mxu0 0.0
    %v861 = vand.u32 %v54, 4294901760
    %v862 = vsub.f32 %v54, %v861
    %863 = vmatpush1.msra.mxu0 %v862
    %864 = vmatprep.subr.mxu0 0.0
    %v865 = vand.u32 %v55, 4294901760
    %v866 = vsub.f32 %v55, %v865
    %867 = vmatpush1.msra.mxu0 %v866
    %868 = vmatprep.subr.mxu0 0.0
    %v869 = vand.u32 %v56, 4294901760
    %v870 = vsub.f32 %v56, %v869
    %871 = vmatpush1.msra.mxu0 %v870
    %872 = vmatprep.subr.mxu0 0.0
    %v873 = vand.u32 %v57, 4294901760
    %v874 = vsub.f32 %v57, %v873
    %875 = vmatpush1.msra.mxu0 %v874
    %876 = vmatprep.subr.mxu0 0.0
    %v877 = vand.u32 %v58, 4294901760
    %v878 = vsub.f32 %v58, %v877
    %879 = vmatpush1.msra.mxu0 %v878
    %880 = vmatprep.subr.mxu0 0.0
    %881 = vmatpush1.msra.mxu0 0.0
    %882 = vmatprep.subr.mxu0 0.0
    %883 = vmatpush1.msra.mxu0 0.0
    %884 = vmatprep.subr.mxu0 0.0
    %885 = vmatpush1.msra.mxu0 0.0
    %886 = vmatprep.subr.mxu0 0.0
    %887 = vmatpush1.msra.mxu0 0.0
    %888 = vmatprep.subr.mxu0 0.0
    %889 = vmatpush1.msra.mxu0 0.0
    %890 = vmatprep.subr.mxu0 0.0
    %891 = vmatpush1.msra.mxu0 0.0
    %892 = vmatprep.subr.mxu0 0.0
    %893 = vmatpush1.msra.mxu0 0.0
    %894 = vmatprep.subr.mxu0 0.0
    %895 = vmatpush1.msra.mxu0 0.0
    %896 = vmatprep.subr.mxu0 0.0
    %897 = vmatpush1.msra.mxu0 0.0
    %898 = vmatprep.subr.mxu0 0.0
    %899 = vmatpush1.msra.mxu0 0.0
    %900 = vmatprep.subr.mxu0 0.0
    %901 = vmatpush1.msra.mxu0 0.0
    %902 = vmatprep.subr.mxu0 0.0
    %903 = vmatpush1.msra.mxu0 0.0
    %904 = vmatprep.subr.mxu0 0.0
    %905 = vmatpush1.msra.mxu0 0.0
    %906 = vmatprep.subr.mxu0 0.0
    %907 = vmatpush1.msra.mxu0 0.0
    %908 = vmatprep.subr.mxu0 0.0
    %909 = vmatpush1.msra.mxu0 0.0
    %910 = vmatprep.subr.mxu0 0.0
    %911 = vmatpush1.msra.mxu0 0.0
    %912 = vmatprep.mubr.f32.mxu0 0.0
    %v913 = vand.u32 %v569, 4294901760
    %v914 = vsub.f32 %v569, %v913
    %915 = vmatmul.mubr.f32.gmra.mrb[0].mxu0 %v914
    %v916 = vpop.f32.mrb[0].mxu0
    %v917 = vadd.f32 %v813, %v916
    %v918 = vpop.f32.mrb[0].mxu0
    %919 = vdwg.mxu0
    %920 = vmatprep.subr.mxu0 0.0
    %v921 = vand.u32 %v43, 4294901760
    %922 = vmatpush1.msra.mxu0 %v921
    %923 = vmatprep.subr.mxu0 0.0
    %v924 = vand.u32 %v44, 4294901760
    %925 = vmatpush1.msra.mxu0 %v924
    %926 = vmatprep.subr.mxu0 0.0
    %v927 = vand.u32 %v45, 4294901760
    %928 = vmatpush1.msra.mxu0 %v927
    %929 = vmatprep.subr.mxu0 0.0
    %v930 = vand.u32 %v46, 4294901760
    %931 = vmatpush1.msra.mxu0 %v930
    %932 = vmatprep.subr.mxu0 0.0
    %v933 = vand.u32 %v47, 4294901760
    %934 = vmatpush1.msra.mxu0 %v933
    %935 = vmatprep.subr.mxu0 0.0
    %v936 = vand.u32 %v48, 4294901760
    %937 = vmatpush1.msra.mxu0 %v936
    %938 = vmatprep.subr.mxu0 0.0
    %v939 = vand.u32 %v49, 4294901760
    %940 = vmatpush1.msra.mxu0 %v939
    %941 = vmatprep.subr.mxu0 0.0
    %v942 = vand.u32 %v50, 4294901760
    %943 = vmatpush1.msra.mxu0 %v942
    %944 = vmatprep.subr.mxu0 0.0
    %v945 = vand.u32 %v51, 4294901760
    %946 = vmatpush1.msra.mxu0 %v945
    %947 = vmatprep.subr.mxu0 0.0
    %v948 = vand.u32 %v52, 4294901760
    %949 = vmatpush1.msra.mxu0 %v948
    %950 = vmatprep.subr.mxu0 0.0
    %v951 = vand.u32 %v53, 4294901760
    %952 = vmatpush1.msra.mxu0 %v951
    %953 = vmatprep.subr.mxu0 0.0
    %v954 = vand.u32 %v54, 4294901760
    %955 = vmatpush1.msra.mxu0 %v954
    %956 = vmatprep.subr.mxu0 0.0
    %v957 = vand.u32 %v55, 4294901760
    %958 = vmatpush1.msra.mxu0 %v957
    %959 = vmatprep.subr.mxu0 0.0
    %v960 = vand.u32 %v56, 4294901760
    %961 = vmatpush1.msra.mxu0 %v960
    %962 = vmatprep.subr.mxu0 0.0
    %v963 = vand.u32 %v57, 4294901760
    %964 = vmatpush1.msra.mxu0 %v963
    %965 = vmatprep.subr.mxu0 0.0
    %v966 = vand.u32 %v58, 4294901760
    %967 = vmatpush1.msra.mxu0 %v966
    %968 = vmatprep.subr.mxu0 0.0
    %969 = vmatpush1.msra.mxu0 0.0
    %970 = vmatprep.subr.mxu0 0.0
    %971 = vmatpush1.msra.mxu0 0.0
    %972 = vmatprep.subr.mxu0 0.0
    %973 = vmatpush1.msra.mxu0 0.0
    %974 = vmatprep.subr.mxu0 0.0
    %975 = vmatpush1.msra.mxu0 0.0
    %976 = vmatprep.subr.mxu0 0.0
    %977 = vmatpush1.msra.mxu0 0.0
    %978 = vmatprep.subr.mxu0 0.0
    %979 = vmatpush1.msra.mxu0 0.0
    %980 = vmatprep.subr.mxu0 0.0
    %981 = vmatpush1.msra.mxu0 0.0
    %982 = vmatprep.subr.mxu0 0.0
    %983 = vmatpush1.msra.mxu0 0.0
    %984 = vmatprep.subr.mxu0 0.0
    %985 = vmatpush1.msra.mxu0 0.0
    %986 = vmatprep.subr.mxu0 0.0
    %987 = vmatpush1.msra.mxu0 0.0
    %988 = vmatprep.subr.mxu0 0.0
    %989 = vmatpush1.msra.mxu0 0.0
    %990 = vmatprep.subr.mxu0 0.0
    %991 = vmatpush1.msra.mxu0 0.0
    %992 = vmatprep.subr.mxu0 0.0
    %993 = vmatpush1.msra.mxu0 0.0
    %994 = vmatprep.subr.mxu0 0.0
    %995 = vmatpush1.msra.mxu0 0.0
    %996 = vmatprep.subr.mxu0 0.0
    %997 = vmatpush1.msra.mxu0 0.0
    %998 = vmatprep.subr.mxu0 0.0
    %999 = vmatpush1.msra.mxu0 0.0
    %1000 = vmatprep.mubr.f32.mxu0 0.0
    %v1001 = vand.u32 %v569, 4294901760
    %v1002 = vsub.f32 %v569, %v1001
    %v1003 = vand.u32 %v1002, 4294901760
    %1004 = vmatmul.mubr.f32.gmra.mrb[0].mxu0 %v1003
    %v1005 = vpop.f32.mrb[0].mxu0
    %v1006 = vadd.f32 %v917, %v1005
    %v1007 = vpop.f32.mrb[0].mxu0
    %1008 = vdwg.mxu0
    %1009 = vmatprep.subr.mxu0 0.0
    %v1010 = vand.u32 %v43, 4294901760
    %v1011 = vsub.f32 %v43, %v1010
    %v1012 = vand.u32 %v1011, 4294901760
    %1013 = vmatpush1.msra.mxu0 %v1012
    %1014 = vmatprep.subr.mxu0 0.0
    %v1015 = vand.u32 %v44, 4294901760
    %v1016 = vsub.f32 %v44, %v1015
    %v1017 = vand.u32 %v1016, 4294901760
    %1018 = vmatpush1.msra.mxu0 %v1017
    %1019 = vmatprep.subr.mxu0 0.0
    %v1020 = vand.u32 %v45, 4294901760
    %v1021 = vsub.f32 %v45, %v1020
    %v1022 = vand.u32 %v1021, 4294901760
    %1023 = vmatpush1.msra.mxu0 %v1022
    %1024 = vmatprep.subr.mxu0 0.0
    %v1025 = vand.u32 %v46, 4294901760
    %v1026 = vsub.f32 %v46, %v1025
    %v1027 = vand.u32 %v1026, 4294901760
    %1028 = vmatpush1.msra.mxu0 %v1027
    %1029 = vmatprep.subr.mxu0 0.0
    %v1030 = vand.u32 %v47, 4294901760
    %v1031 = vsub.f32 %v47, %v1030
    %v1032 = vand.u32 %v1031, 4294901760
    %1033 = vmatpush1.msra.mxu0 %v1032
    %1034 = vmatprep.subr.mxu0 0.0
    %v1035 = vand.u32 %v48, 4294901760
    %v1036 = vsub.f32 %v48, %v1035
    %v1037 = vand.u32 %v1036, 4294901760
    %1038 = vmatpush1.msra.mxu0 %v1037
    %1039 = vmatprep.subr.mxu0 0.0
    %v1040 = vand.u32 %v49, 4294901760
    %v1041 = vsub.f32 %v49, %v1040
    %v1042 = vand.u32 %v1041, 4294901760
    %1043 = vmatpush1.msra.mxu0 %v1042
    %1044 = vmatprep.subr.mxu0 0.0
    %v1045 = vand.u32 %v50, 4294901760
    %v1046 = vsub.f32 %v50, %v1045
    %v1047 = vand.u32 %v1046, 4294901760
    %1048 = vmatpush1.msra.mxu0 %v1047
    %1049 = vmatprep.subr.mxu0 0.0
    %v1050 = vand.u32 %v51, 4294901760
    %v1051 = vsub.f32 %v51, %v1050
    %v1052 = vand.u32 %v1051, 4294901760
    %1053 = vmatpush1.msra.mxu0 %v1052
    %1054 = vmatprep.subr.mxu0 0.0
    %v1055 = vand.u32 %v52, 4294901760
    %v1056 = vsub.f32 %v52, %v1055
    %v1057 = vand.u32 %v1056, 4294901760
    %1058 = vmatpush1.msra.mxu0 %v1057
    %1059 = vmatprep.subr.mxu0 0.0
    %v1060 = vand.u32 %v53, 4294901760
    %v1061 = vsub.f32 %v53, %v1060
    %v1062 = vand.u32 %v1061, 4294901760
    %1063 = vmatpush1.msra.mxu0 %v1062
    %1064 = vmatprep.subr.mxu0 0.0
    %v1065 = vand.u32 %v54, 4294901760
    %v1066 = vsub.f32 %v54, %v1065
    %v1067 = vand.u32 %v1066, 4294901760
    %1068 = vmatpush1.msra.mxu0 %v1067
    %1069 = vmatprep.subr.mxu0 0.0
    %v1070 = vand.u32 %v55, 4294901760
    %v1071 = vsub.f32 %v55, %v1070
    %v1072 = vand.u32 %v1071, 4294901760
    %1073 = vmatpush1.msra.mxu0 %v1072
    %1074 = vmatprep.subr.mxu0 0.0
    %v1075 = vand.u32 %v56, 4294901760
    %v1076 = vsub.f32 %v56, %v1075
    %v1077 = vand.u32 %v1076, 4294901760
    %1078 = vmatpush1.msra.mxu0 %v1077
    %1079 = vmatprep.subr.mxu0 0.0
    %v1080 = vand.u32 %v57, 4294901760
    %v1081 = vsub.f32 %v57, %v1080
    %v1082 = vand.u32 %v1081, 4294901760
    %1083 = vmatpush1.msra.mxu0 %v1082
    %1084 = vmatprep.subr.mxu0 0.0
    %v1085 = vand.u32 %v58, 4294901760
    %v1086 = vsub.f32 %v58, %v1085
    %v1087 = vand.u32 %v1086, 4294901760
    %1088 = vmatpush1.msra.mxu0 %v1087
    %1089 = vmatprep.subr.mxu0 0.0
    %1090 = vmatpush1.msra.mxu0 0.0
    %1091 = vmatprep.subr.mxu0 0.0
    %1092 = vmatpush1.msra.mxu0 0.0
    %1093 = vmatprep.subr.mxu0 0.0
    %1094 = vmatpush1.msra.mxu0 0.0
    %1095 = vmatprep.subr.mxu0 0.0
    %1096 = vmatpush1.msra.mxu0 0.0
    %1097 = vmatprep.subr.mxu0 0.0
    %1098 = vmatpush1.msra.mxu0 0.0
    %1099 = vmatprep.subr.mxu0 0.0
    %1100 = vmatpush1.msra.mxu0 0.0
    %1101 = vmatprep.subr.mxu0 0.0
    %1102 = vmatpush1.msra.mxu0 0.0
    %1103 = vmatprep.subr.mxu0 0.0
    %1104 = vmatpush1.msra.mxu0 0.0
    %1105 = vmatprep.subr.mxu0 0.0
    %1106 = vmatpush1.msra.mxu0 0.0
    %1107 = vmatprep.subr.mxu0 0.0
    %1108 = vmatpush1.msra.mxu0 0.0
    %1109 = vmatprep.subr.mxu0 0.0
    %1110 = vmatpush1.msra.mxu0 0.0
    %1111 = vmatprep.subr.mxu0 0.0
    %1112 = vmatpush1.msra.mxu0 0.0
    %1113 = vmatprep.subr.mxu0 0.0
    %1114 = vmatpush1.msra.mxu0 0.0
    %1115 = vmatprep.subr.mxu0 0.0
    %1116 = vmatpush1.msra.mxu0 0.0
    %1117 = vmatprep.subr.mxu0 0.0
    %1118 = vmatpush1.msra.mxu0 0.0
    %1119 = vmatprep.subr.mxu0 0.0
    %1120 = vmatpush1.msra.mxu0 0.0
    %1121 = vmatprep.mubr.f32.mxu0 0.0
    %v1122 = vand.u32 %v569, 4294901760
    %1123 = vmatmul.mubr.f32.gmra.mrb[0].mxu0 %v1122
    %v1124 = vpop.f32.mrb[0].mxu0
    %v1125 = vadd.f32 %v1006, %v1124
    %v1126 = vpop.f32.mrb[0].mxu0
    %1127 = vdwg.mxu0
    %1128 = vmatprep.subr.mxu0 0.0
    %v1129 = vand.u32 %v43, 4294901760
    %1130 = vmatpush1.msra.mxu0 %v1129
    %1131 = vmatprep.subr.mxu0 0.0
    %v1132 = vand.u32 %v44, 4294901760
    %1133 = vmatpush1.msra.mxu0 %v1132
    %1134 = vmatprep.subr.mxu0 0.0
    %v1135 = vand.u32 %v45, 4294901760
    %1136 = vmatpush1.msra.mxu0 %v1135
    %1137 = vmatprep.subr.mxu0 0.0
    %v1138 = vand.u32 %v46, 4294901760
    %1139 = vmatpush1.msra.mxu0 %v1138
    %1140 = vmatprep.subr.mxu0 0.0
    %v1141 = vand.u32 %v47, 4294901760
    %1142 = vmatpush1.msra.mxu0 %v1141
    %1143 = vmatprep.subr.mxu0 0.0
    %v1144 = vand.u32 %v48, 4294901760
    %1145 = vmatpush1.msra.mxu0 %v1144
    %1146 = vmatprep.subr.mxu0 0.0
    %v1147 = vand.u32 %v49, 4294901760
    %1148 = vmatpush1.msra.mxu0 %v1147
    %1149 = vmatprep.subr.mxu0 0.0
    %v1150 = vand.u32 %v50, 4294901760
    %1151 = vmatpush1.msra.mxu0 %v1150
    %1152 = vmatprep.subr.mxu0 0.0
    %v1153 = vand.u32 %v51, 4294901760
    %1154 = vmatpush1.msra.mxu0 %v1153
    %1155 = vmatprep.subr.mxu0 0.0
    %v1156 = vand.u32 %v52, 4294901760
    %1157 = vmatpush1.msra.mxu0 %v1156
    %1158 = vmatprep.subr.mxu0 0.0
    %v1159 = vand.u32 %v53, 4294901760
    %1160 = vmatpush1.msra.mxu0 %v1159
    %1161 = vmatprep.subr.mxu0 0.0
    %v1162 = vand.u32 %v54, 4294901760
    %1163 = vmatpush1.msra.mxu0 %v1162
    %1164 = vmatprep.subr.mxu0 0.0
    %v1165 = vand.u32 %v55, 4294901760
    %1166 = vmatpush1.msra.mxu0 %v1165
    %1167 = vmatprep.subr.mxu0 0.0
    %v1168 = vand.u32 %v56, 4294901760
    %1169 = vmatpush1.msra.mxu0 %v1168
    %1170 = vmatprep.subr.mxu0 0.0
    %v1171 = vand.u32 %v57, 4294901760
    %1172 = vmatpush1.msra.mxu0 %v1171
    %1173 = vmatprep.subr.mxu0 0.0
    %v1174 = vand.u32 %v58, 4294901760
    %1175 = vmatpush1.msra.mxu0 %v1174
    %1176 = vmatprep.subr.mxu0 0.0
    %1177 = vmatpush1.msra.mxu0 0.0
    %1178 = vmatprep.subr.mxu0 0.0
    %1179 = vmatpush1.msra.mxu0 0.0
    %1180 = vmatprep.subr.mxu0 0.0
    %1181 = vmatpush1.msra.mxu0 0.0
    %1182 = vmatprep.subr.mxu0 0.0
    %1183 = vmatpush1.msra.mxu0 0.0
    %1184 = vmatprep.subr.mxu0 0.0
    %1185 = vmatpush1.msra.mxu0 0.0
    %1186 = vmatprep.subr.mxu0 0.0
    %1187 = vmatpush1.msra.mxu0 0.0
    %1188 = vmatprep.subr.mxu0 0.0
    %1189 = vmatpush1.msra.mxu0 0.0
    %1190 = vmatprep.subr.mxu0 0.0
    %1191 = vmatpush1.msra.mxu0 0.0
    %1192 = vmatprep.subr.mxu0 0.0
    %1193 = vmatpush1.msra.mxu0 0.0
    %1194 = vmatprep.subr.mxu0 0.0
    %1195 = vmatpush1.msra.mxu0 0.0
    %1196 = vmatprep.subr.mxu0 0.0
    %1197 = vmatpush1.msra.mxu0 0.0
    %1198 = vmatprep.subr.mxu0 0.0
    %1199 = vmatpush1.msra.mxu0 0.0
    %1200 = vmatprep.subr.mxu0 0.0
    %1201 = vmatpush1.msra.mxu0 0.0
    %1202 = vmatprep.subr.mxu0 0.0
    %1203 = vmatpush1.msra.mxu0 0.0
    %1204 = vmatprep.subr.mxu0 0.0
    %1205 = vmatpush1.msra.mxu0 0.0
    %1206 = vmatprep.subr.mxu0 0.0
    %1207 = vmatpush1.msra.mxu0 0.0
    %1208 = vmatprep.mubr.f32.mxu0 0.0
    %v1209 = vand.u32 %v569, 4294901760
    %1210 = vmatmul.mubr.f32.gmra.mrb[0].mxu0 %v1209
    %v1211 = vpop.f32.mrb[0].mxu0
    %v1212 = vadd.f32 %v1125, %v1211
    %v1213 = vpop.f32.mrb[0].mxu0
    %1214 = vdwg.mxu0
    %v1215 = vmax.f32 %v1212, 0.0
    %v1216 = vlaneseq
    %v1217 = vshrl.u32 %v1216, 7
    %v1218 = vsub.s32 2, %v1217
    %v1219 = vrot.slane %v75, %v1218
    %1220 = vmatprep.subr.mxu0 0.0
    %v1221 = vand.u32 %v59, 4294901760
    %1222 = vmatpush1.msra.mxu0 %v1221
    %1223 = vmatprep.subr.mxu0 0.0
    %v1224 = vand.u32 %v60, 4294901760
    %1225 = vmatpush1.msra.mxu0 %v1224
    %1226 = vmatprep.subr.mxu0 0.0
    %v1227 = vand.u32 %v61, 4294901760
    %1228 = vmatpush1.msra.mxu0 %v1227
    %1229 = vmatprep.subr.mxu0 0.0
    %v1230 = vand.u32 %v62, 4294901760
    %1231 = vmatpush1.msra.mxu0 %v1230
    %1232 = vmatprep.subr.mxu0 0.0
    %v1233 = vand.u32 %v63, 4294901760
    %1234 = vmatpush1.msra.mxu0 %v1233
    %1235 = vmatprep.subr.mxu0 0.0
    %v1236 = vand.u32 %v64, 4294901760
    %1237 = vmatpush1.msra.mxu0 %v1236
    %1238 = vmatprep.subr.mxu0 0.0
    %v1239 = vand.u32 %v65, 4294901760
    %1240 = vmatpush1.msra.mxu0 %v1239
    %1241 = vmatprep.subr.mxu0 0.0
    %v1242 = vand.u32 %v66, 4294901760
    %1243 = vmatpush1.msra.mxu0 %v1242
    %1244 = vmatprep.subr.mxu0 0.0
    %v1245 = vand.u32 %v67, 4294901760
    %1246 = vmatpush1.msra.mxu0 %v1245
    %1247 = vmatprep.subr.mxu0 0.0
    %v1248 = vand.u32 %v68, 4294901760
    %1249 = vmatpush1.msra.mxu0 %v1248
    %1250 = vmatprep.subr.mxu0 0.0
    %v1251 = vand.u32 %v69, 4294901760
    %1252 = vmatpush1.msra.mxu0 %v1251
    %1253 = vmatprep.subr.mxu0 0.0
    %v1254 = vand.u32 %v70, 4294901760
    %1255 = vmatpush1.msra.mxu0 %v1254
    %1256 = vmatprep.subr.mxu0 0.0
    %v1257 = vand.u32 %v71, 4294901760
    %1258 = vmatpush1.msra.mxu0 %v1257
    %1259 = vmatprep.subr.mxu0 0.0
    %v1260 = vand.u32 %v72, 4294901760
    %1261 = vmatpush1.msra.mxu0 %v1260
    %1262 = vmatprep.subr.mxu0 0.0
    %v1263 = vand.u32 %v73, 4294901760
    %1264 = vmatpush1.msra.mxu0 %v1263
    %1265 = vmatprep.subr.mxu0 0.0
    %v1266 = vand.u32 %v74, 4294901760
    %1267 = vmatpush1.msra.mxu0 %v1266
    %1268 = vmatprep.subr.mxu0 0.0
    %1269 = vmatpush1.msra.mxu0 0.0
    %1270 = vmatprep.subr.mxu0 0.0
    %1271 = vmatpush1.msra.mxu0 0.0
    %1272 = vmatprep.subr.mxu0 0.0
    %1273 = vmatpush1.msra.mxu0 0.0
    %1274 = vmatprep.subr.mxu0 0.0
    %1275 = vmatpush1.msra.mxu0 0.0
    %1276 = vmatprep.subr.mxu0 0.0
    %1277 = vmatpush1.msra.mxu0 0.0
    %1278 = vmatprep.subr.mxu0 0.0
    %1279 = vmatpush1.msra.mxu0 0.0
    %1280 = vmatprep.subr.mxu0 0.0
    %1281 = vmatpush1.msra.mxu0 0.0
    %1282 = vmatprep.subr.mxu0 0.0
    %1283 = vmatpush1.msra.mxu0 0.0
    %1284 = vmatprep.subr.mxu0 0.0
    %1285 = vmatpush1.msra.mxu0 0.0
    %1286 = vmatprep.subr.mxu0 0.0
    %1287 = vmatpush1.msra.mxu0 0.0
    %1288 = vmatprep.subr.mxu0 0.0
    %1289 = vmatpush1.msra.mxu0 0.0
    %1290 = vmatprep.subr.mxu0 0.0
    %1291 = vmatpush1.msra.mxu0 0.0
    %1292 = vmatprep.subr.mxu0 0.0
    %1293 = vmatpush1.msra.mxu0 0.0
    %1294 = vmatprep.subr.mxu0 0.0
    %1295 = vmatpush1.msra.mxu0 0.0
    %1296 = vmatprep.subr.mxu0 0.0
    %1297 = vmatpush1.msra.mxu0 0.0
    %1298 = vmatprep.subr.mxu0 0.0
    %1299 = vmatpush1.msra.mxu0 0.0
    %1300 = vmatprep.mubr.f32.mxu0 0.0
    %v1301 = vand.u32 %v1215, 4294901760
    %v1302 = vsub.f32 %v1215, %v1301
    %v1303 = vand.u32 %v1302, 4294901760
    %v1304 = vsub.f32 %v1302, %v1303
    %v1305 = vand.u32 %v1304, 4294901760
    %1306 = vmatmul.mubr.f32.gmra.mrb[0].mxu0 %v1305
    %v1307 = vpop.f32.mrb[0].mxu0
    %v1308 = vadd.f32 %v1219, %v1307
    %v1309 = vpop.f32.mrb[0].mxu0
    %1310 = vdwg.mxu0
    %1311 = vmatprep.subr.mxu0 0.0
    %v1312 = vand.u32 %v59, 4294901760
    %v1313 = vsub.f32 %v59, %v1312
    %v1314 = vand.u32 %v1313, 4294901760
    %v1315 = vsub.f32 %v1313, %v1314
    %v1316 = vand.u32 %v1315, 4294901760
    %1317 = vmatpush1.msra.mxu0 %v1316
    %1318 = vmatprep.subr.mxu0 0.0
    %v1319 = vand.u32 %v60, 4294901760
    %v1320 = vsub.f32 %v60, %v1319
    %v1321 = vand.u32 %v1320, 4294901760
    %v1322 = vsub.f32 %v1320, %v1321
    %v1323 = vand.u32 %v1322, 4294901760
    %1324 = vmatpush1.msra.mxu0 %v1323
    %1325 = vmatprep.subr.mxu0 0.0
    %v1326 = vand.u32 %v61, 4294901760
    %v1327 = vsub.f32 %v61, %v1326
    %v1328 = vand.u32 %v1327, 4294901760
    %v1329 = vsub.f32 %v1327, %v1328
    %v1330 = vand.u32 %v1329, 4294901760
    %1331 = vmatpush1.msra.mxu0 %v1330
    %1332 = vmatprep.subr.mxu0 0.0
    %v1333 = vand.u32 %v62, 4294901760
    %v1334 = vsub.f32 %v62, %v1333
    %v1335 = vand.u32 %v1334, 4294901760
    %v1336 = vsub.f32 %v1334, %v1335
    %v1337 = vand.u32 %v1336, 4294901760
    %1338 = vmatpush1.msra.mxu0 %v1337
    %1339 = vmatprep.subr.mxu0 0.0
    %v1340 = vand.u32 %v63, 4294901760
    %v1341 = vsub.f32 %v63, %v1340
    %v1342 = vand.u32 %v1341, 4294901760
    %v1343 = vsub.f32 %v1341, %v1342
    %v1344 = vand.u32 %v1343, 4294901760
    %1345 = vmatpush1.msra.mxu0 %v1344
    %1346 = vmatprep.subr.mxu0 0.0
    %v1347 = vand.u32 %v64, 4294901760
    %v1348 = vsub.f32 %v64, %v1347
    %v1349 = vand.u32 %v1348, 4294901760
    %v1350 = vsub.f32 %v1348, %v1349
    %v1351 = vand.u32 %v1350, 4294901760
    %1352 = vmatpush1.msra.mxu0 %v1351
    %1353 = vmatprep.subr.mxu0 0.0
    %v1354 = vand.u32 %v65, 4294901760
    %v1355 = vsub.f32 %v65, %v1354
    %v1356 = vand.u32 %v1355, 4294901760
    %v1357 = vsub.f32 %v1355, %v1356
    %v1358 = vand.u32 %v1357, 4294901760
    %1359 = vmatpush1.msra.mxu0 %v1358
    %1360 = vmatprep.subr.mxu0 0.0
    %v1361 = vand.u32 %v66, 4294901760
    %v1362 = vsub.f32 %v66, %v1361
    %v1363 = vand.u32 %v1362, 4294901760
    %v1364 = vsub.f32 %v1362, %v1363
    %v1365 = vand.u32 %v1364, 4294901760
    %1366 = vmatpush1.msra.mxu0 %v1365
    %1367 = vmatprep.subr.mxu0 0.0
    %v1368 = vand.u32 %v67, 4294901760
    %v1369 = vsub.f32 %v67, %v1368
    %v1370 = vand.u32 %v1369, 4294901760
    %v1371 = vsub.f32 %v1369, %v1370
    %v1372 = vand.u32 %v1371, 4294901760
    %1373 = vmatpush1.msra.mxu0 %v1372
    %1374 = vmatprep.subr.mxu0 0.0
    %v1375 = vand.u32 %v68, 4294901760
    %v1376 = vsub.f32 %v68, %v1375
    %v1377 = vand.u32 %v1376, 4294901760
    %v1378 = vsub.f32 %v1376, %v1377
    %v1379 = vand.u32 %v1378, 4294901760
    %1380 = vmatpush1.msra.mxu0 %v1379
    %1381 = vmatprep.subr.mxu0 0.0
    %v1382 = vand.u32 %v69, 4294901760
    %v1383 = vsub.f32 %v69, %v1382
    %v1384 = vand.u32 %v1383, 4294901760
    %v1385 = vsub.f32 %v1383, %v1384
    %v1386 = vand.u32 %v1385, 4294901760
    %1387 = vmatpush1.msra.mxu0 %v1386
    %1388 = vmatprep.subr.mxu0 0.0
    %v1389 = vand.u32 %v70, 4294901760
    %v1390 = vsub.f32 %v70, %v1389
    %v1391 = vand.u32 %v1390, 4294901760
    %v1392 = vsub.f32 %v1390, %v1391
    %v1393 = vand.u32 %v1392, 4294901760
    %1394 = vmatpush1.msra.mxu0 %v1393
    %1395 = vmatprep.subr.mxu0 0.0
    %v1396 = vand.u32 %v71, 4294901760
    %v1397 = vsub.f32 %v71, %v1396
    %v1398 = vand.u32 %v1397, 4294901760
    %v1399 = vsub.f32 %v1397, %v1398
    %v1400 = vand.u32 %v1399, 4294901760
    %1401 = vmatpush1.msra.mxu0 %v1400
    %1402 = vmatprep.subr.mxu0 0.0
    %v1403 = vand.u32 %v72, 4294901760
    %v1404 = vsub.f32 %v72, %v1403
    %v1405 = vand.u32 %v1404, 4294901760
    %v1406 = vsub.f32 %v1404, %v1405
    %v1407 = vand.u32 %v1406, 4294901760
    %1408 = vmatpush1.msra.mxu0 %v1407
    %1409 = vmatprep.subr.mxu0 0.0
    %v1410 = vand.u32 %v73, 4294901760
    %v1411 = vsub.f32 %v73, %v1410
    %v1412 = vand.u32 %v1411, 4294901760
    %v1413 = vsub.f32 %v1411, %v1412
    %v1414 = vand.u32 %v1413, 4294901760
    %1415 = vmatpush1.msra.mxu0 %v1414
    %1416 = vmatprep.subr.mxu0 0.0
    %v1417 = vand.u32 %v74, 4294901760
    %v1418 = vsub.f32 %v74, %v1417
    %v1419 = vand.u32 %v1418, 4294901760
    %v1420 = vsub.f32 %v1418, %v1419
    %v1421 = vand.u32 %v1420, 4294901760
    %1422 = vmatpush1.msra.mxu0 %v1421
    %1423 = vmatprep.subr.mxu0 0.0
    %1424 = vmatpush1.msra.mxu0 0.0
    %1425 = vmatprep.subr.mxu0 0.0
    %1426 = vmatpush1.msra.mxu0 0.0
    %1427 = vmatprep.subr.mxu0 0.0
    %1428 = vmatpush1.msra.mxu0 0.0
    %1429 = vmatprep.subr.mxu0 0.0
    %1430 = vmatpush1.msra.mxu0 0.0
    %1431 = vmatprep.subr.mxu0 0.0
    %1432 = vmatpush1.msra.mxu0 0.0
    %1433 = vmatprep.subr.mxu0 0.0
    %1434 = vmatpush1.msra.mxu0 0.0
    %1435 = vmatprep.subr.mxu0 0.0
    %1436 = vmatpush1.msra.mxu0 0.0
    %1437 = vmatprep.subr.mxu0 0.0
    %1438 = vmatpush1.msra.mxu0 0.0
    %1439 = vmatprep.subr.mxu0 0.0
    %1440 = vmatpush1.msra.mxu0 0.0
    %1441 = vmatprep.subr.mxu0 0.0
    %1442 = vmatpush1.msra.mxu0 0.0
    %1443 = vmatprep.subr.mxu0 0.0
    %1444 = vmatpush1.msra.mxu0 0.0
    %1445 = vmatprep.subr.mxu0 0.0
    %1446 = vmatpush1.msra.mxu0 0.0
    %1447 = vmatprep.subr.mxu0 0.0
    %1448 = vmatpush1.msra.mxu0 0.0
    %1449 = vmatprep.subr.mxu0 0.0
    %1450 = vmatpush1.msra.mxu0 0.0
    %1451 = vmatprep.subr.mxu0 0.0
    %1452 = vmatpush1.msra.mxu0 0.0
    %1453 = vmatprep.subr.mxu0 0.0
    %1454 = vmatpush1.msra.mxu0 0.0
    %1455 = vmatprep.mubr.f32.mxu0 0.0
    %v1456 = vand.u32 %v1215, 4294901760
    %1457 = vmatmul.mubr.f32.gmra.mrb[0].mxu0 %v1456
    %v1458 = vpop.f32.mrb[0].mxu0
    %v1459 = vadd.f32 %v1308, %v1458
    %v1460 = vpop.f32.mrb[0].mxu0
    %1461 = vdwg.mxu0
    %1462 = vmatprep.subr.mxu0 0.0
    %v1463 = vand.u32 %v59, 4294901760
    %v1464 = vsub.f32 %v59, %v1463
    %1465 = vmatpush1.msra.mxu0 %v1464
    %1466 = vmatprep.subr.mxu0 0.0
    %v1467 = vand.u32 %v60, 4294901760
    %v1468 = vsub.f32 %v60, %v1467
    %1469 = vmatpush1.msra.mxu0 %v1468
    %1470 = vmatprep.subr.mxu0 0.0
    %v1471 = vand.u32 %v61, 4294901760
    %v1472 = vsub.f32 %v61, %v1471
    %1473 = vmatpush1.msra.mxu0 %v1472
    %1474 = vmatprep.subr.mxu0 0.0
    %v1475 = vand.u32 %v62, 4294901760
    %v1476 = vsub.f32 %v62, %v1475
    %1477 = vmatpush1.msra.mxu0 %v1476
    %1478 = vmatprep.subr.mxu0 0.0
    %v1479 = vand.u32 %v63, 4294901760
    %v1480 = vsub.f32 %v63, %v1479
    %1481 = vmatpush1.msra.mxu0 %v1480
    %1482 = vmatprep.subr.mxu0 0.0
    %v1483 = vand.u32 %v64, 4294901760
    %v1484 = vsub.f32 %v64, %v1483
    %1485 = vmatpush1.msra.mxu0 %v1484
    %1486 = vmatprep.subr.mxu0 0.0
    %v1487 = vand.u32 %v65, 4294901760
    %v1488 = vsub.f32 %v65, %v1487
    %1489 = vmatpush1.msra.mxu0 %v1488
    %1490 = vmatprep.subr.mxu0 0.0
    %v1491 = vand.u32 %v66, 4294901760
    %v1492 = vsub.f32 %v66, %v1491
    %1493 = vmatpush1.msra.mxu0 %v1492
    %1494 = vmatprep.subr.mxu0 0.0
    %v1495 = vand.u32 %v67, 4294901760
    %v1496 = vsub.f32 %v67, %v1495
    %1497 = vmatpush1.msra.mxu0 %v1496
    %1498 = vmatprep.subr.mxu0 0.0
    %v1499 = vand.u32 %v68, 4294901760
    %v1500 = vsub.f32 %v68, %v1499
    %1501 = vmatpush1.msra.mxu0 %v1500
    %1502 = vmatprep.subr.mxu0 0.0
    %v1503 = vand.u32 %v69, 4294901760
    %v1504 = vsub.f32 %v69, %v1503
    %1505 = vmatpush1.msra.mxu0 %v1504
    %1506 = vmatprep.subr.mxu0 0.0
    %v1507 = vand.u32 %v70, 4294901760
    %v1508 = vsub.f32 %v70, %v1507
    %1509 = vmatpush1.msra.mxu0 %v1508
    %1510 = vmatprep.subr.mxu0 0.0
    %v1511 = vand.u32 %v71, 4294901760
    %v1512 = vsub.f32 %v71, %v1511
    %1513 = vmatpush1.msra.mxu0 %v1512
    %1514 = vmatprep.subr.mxu0 0.0
    %v1515 = vand.u32 %v72, 4294901760
    %v1516 = vsub.f32 %v72, %v1515
    %1517 = vmatpush1.msra.mxu0 %v1516
    %1518 = vmatprep.subr.mxu0 0.0
    %v1519 = vand.u32 %v73, 4294901760
    %v1520 = vsub.f32 %v73, %v1519
    %1521 = vmatpush1.msra.mxu0 %v1520
    %1522 = vmatprep.subr.mxu0 0.0
    %v1523 = vand.u32 %v74, 4294901760
    %v1524 = vsub.f32 %v74, %v1523
    %1525 = vmatpush1.msra.mxu0 %v1524
    %1526 = vmatprep.subr.mxu0 0.0
    %1527 = vmatpush1.msra.mxu0 0.0
    %1528 = vmatprep.subr.mxu0 0.0
    %1529 = vmatpush1.msra.mxu0 0.0
    %1530 = vmatprep.subr.mxu0 0.0
    %1531 = vmatpush1.msra.mxu0 0.0
    %1532 = vmatprep.subr.mxu0 0.0
    %1533 = vmatpush1.msra.mxu0 0.0
    %1534 = vmatprep.subr.mxu0 0.0
    %1535 = vmatpush1.msra.mxu0 0.0
    %1536 = vmatprep.subr.mxu0 0.0
    %1537 = vmatpush1.msra.mxu0 0.0
    %1538 = vmatprep.subr.mxu0 0.0
    %1539 = vmatpush1.msra.mxu0 0.0
    %1540 = vmatprep.subr.mxu0 0.0
    %1541 = vmatpush1.msra.mxu0 0.0
    %1542 = vmatprep.subr.mxu0 0.0
    %1543 = vmatpush1.msra.mxu0 0.0
    %1544 = vmatprep.subr.mxu0 0.0
    %1545 = vmatpush1.msra.mxu0 0.0
    %1546 = vmatprep.subr.mxu0 0.0
    %1547 = vmatpush1.msra.mxu0 0.0
    %1548 = vmatprep.subr.mxu0 0.0
    %1549 = vmatpush1.msra.mxu0 0.0
    %1550 = vmatprep.subr.mxu0 0.0
    %1551 = vmatpush1.msra.mxu0 0.0
    %1552 = vmatprep.subr.mxu0 0.0
    %1553 = vmatpush1.msra.mxu0 0.0
    %1554 = vmatprep.subr.mxu0 0.0
    %1555 = vmatpush1.msra.mxu0 0.0
    %1556 = vmatprep.subr.mxu0 0.0
    %1557 = vmatpush1.msra.mxu0 0.0
    %1558 = vmatprep.mubr.f32.mxu0 0.0
    %v1559 = vand.u32 %v1215, 4294901760
    %v1560 = vsub.f32 %v1215, %v1559
    %1561 = vmatmul.mubr.f32.gmra.mrb[0].mxu0 %v1560
    %v1562 = vpop.f32.mrb[0].mxu0
    %v1563 = vadd.f32 %v1459, %v1562
    %v1564 = vpop.f32.mrb[0].mxu0
    %1565 = vdwg.mxu0
    %1566 = vmatprep.subr.mxu0 0.0
    %v1567 = vand.u32 %v59, 4294901760
    %1568 = vmatpush1.msra.mxu0 %v1567
    %1569 = vmatprep.subr.mxu0 0.0
    %v1570 = vand.u32 %v60, 4294901760
    %1571 = vmatpush1.msra.mxu0 %v1570
    %1572 = vmatprep.subr.mxu0 0.0
    %v1573 = vand.u32 %v61, 4294901760
    %1574 = vmatpush1.msra.mxu0 %v1573
    %1575 = vmatprep.subr.mxu0 0.0
    %v1576 = vand.u32 %v62, 4294901760
    %1577 = vmatpush1.msra.mxu0 %v1576
    %1578 = vmatprep.subr.mxu0 0.0
    %v1579 = vand.u32 %v63, 4294901760
    %1580 = vmatpush1.msra.mxu0 %v1579
    %1581 = vmatprep.subr.mxu0 0.0
    %v1582 = vand.u32 %v64, 4294901760
    %1583 = vmatpush1.msra.mxu0 %v1582
    %1584 = vmatprep.subr.mxu0 0.0
    %v1585 = vand.u32 %v65, 4294901760
    %1586 = vmatpush1.msra.mxu0 %v1585
    %1587 = vmatprep.subr.mxu0 0.0
    %v1588 = vand.u32 %v66, 4294901760
    %1589 = vmatpush1.msra.mxu0 %v1588
    %1590 = vmatprep.subr.mxu0 0.0
    %v1591 = vand.u32 %v67, 4294901760
    %1592 = vmatpush1.msra.mxu0 %v1591
    %1593 = vmatprep.subr.mxu0 0.0
    %v1594 = vand.u32 %v68, 4294901760
    %1595 = vmatpush1.msra.mxu0 %v1594
    %1596 = vmatprep.subr.mxu0 0.0
    %v1597 = vand.u32 %v69, 4294901760
    %1598 = vmatpush1.msra.mxu0 %v1597
    %1599 = vmatprep.subr.mxu0 0.0
    %v1600 = vand.u32 %v70, 4294901760
    %1601 = vmatpush1.msra.mxu0 %v1600
    %1602 = vmatprep.subr.mxu0 0.0
    %v1603 = vand.u32 %v71, 4294901760
    %1604 = vmatpush1.msra.mxu0 %v1603
    %1605 = vmatprep.subr.mxu0 0.0
    %v1606 = vand.u32 %v72, 4294901760
    %1607 = vmatpush1.msra.mxu0 %v1606
    %1608 = vmatprep.subr.mxu0 0.0
    %v1609 = vand.u32 %v73, 4294901760
    %1610 = vmatpush1.msra.mxu0 %v1609
    %1611 = vmatprep.subr.mxu0 0.0
    %v1612 = vand.u32 %v74, 4294901760
    %1613 = vmatpush1.msra.mxu0 %v1612
    %1614 = vmatprep.subr.mxu0 0.0
    %1615 = vmatpush1.msra.mxu0 0.0
    %1616 = vmatprep.subr.mxu0 0.0
    %1617 = vmatpush1.msra.mxu0 0.0
    %1618 = vmatprep.subr.mxu0 0.0
    %1619 = vmatpush1.msra.mxu0 0.0
    %1620 = vmatprep.subr.mxu0 0.0
    %1621 = vmatpush1.msra.mxu0 0.0
    %1622 = vmatprep.subr.mxu0 0.0
    %1623 = vmatpush1.msra.mxu0 0.0
    %1624 = vmatprep.subr.mxu0 0.0
    %1625 = vmatpush1.msra.mxu0 0.0
    %1626 = vmatprep.subr.mxu0 0.0
    %1627 = vmatpush1.msra.mxu0 0.0
    %1628 = vmatprep.subr.mxu0 0.0
    %1629 = vmatpush1.msra.mxu0 0.0
    %1630 = vmatprep.subr.mxu0 0.0
    %1631 = vmatpush1.msra.mxu0 0.0
    %1632 = vmatprep.subr.mxu0 0.0
    %1633 = vmatpush1.msra.mxu0 0.0
    %1634 = vmatprep.subr.mxu0 0.0
    %1635 = vmatpush1.msra.mxu0 0.0
    %1636 = vmatprep.subr.mxu0 0.0
    %1637 = vmatpush1.msra.mxu0 0.0
    %1638 = vmatprep.subr.mxu0 0.0
    %1639 = vmatpush1.msra.mxu0 0.0
    %1640 = vmatprep.subr.mxu0 0.0
    %1641 = vmatpush1.msra.mxu0 0.0
    %1642 = vmatprep.subr.mxu0 0.0
    %1643 = vmatpush1.msra.mxu0 0.0
    %1644 = vmatprep.subr.mxu0 0.0
    %1645 = vmatpush1.msra.mxu0 0.0
    %1646 = vmatprep.mubr.f32.mxu0 0.0
    %v1647 = vand.u32 %v1215, 4294901760
    %v1648 = vsub.f32 %v1215, %v1647
    %v1649 = vand.u32 %v1648, 4294901760
    %1650 = vmatmul.mubr.f32.gmra.mrb[0].mxu0 %v1649
    %v1651 = vpop.f32.mrb[0].mxu0
    %v1652 = vadd.f32 %v1563, %v1651
    %v1653 = vpop.f32.mrb[0].mxu0
    %1654 = vdwg.mxu0
    %1655 = vmatprep.subr.mxu0 0.0
    %v1656 = vand.u32 %v59, 4294901760
    %v1657 = vsub.f32 %v59, %v1656
    %v1658 = vand.u32 %v1657, 4294901760
    %1659 = vmatpush1.msra.mxu0 %v1658
    %1660 = vmatprep.subr.mxu0 0.0
    %v1661 = vand.u32 %v60, 4294901760
    %v1662 = vsub.f32 %v60, %v1661
    %v1663 = vand.u32 %v1662, 4294901760
    %1664 = vmatpush1.msra.mxu0 %v1663
    %1665 = vmatprep.subr.mxu0 0.0
    %v1666 = vand.u32 %v61, 4294901760
    %v1667 = vsub.f32 %v61, %v1666
    %v1668 = vand.u32 %v1667, 4294901760
    %1669 = vmatpush1.msra.mxu0 %v1668
    %1670 = vmatprep.subr.mxu0 0.0
    %v1671 = vand.u32 %v62, 4294901760
    %v1672 = vsub.f32 %v62, %v1671
    %v1673 = vand.u32 %v1672, 4294901760
    %1674 = vmatpush1.msra.mxu0 %v1673
    %1675 = vmatprep.subr.mxu0 0.0
    %v1676 = vand.u32 %v63, 4294901760
    %v1677 = vsub.f32 %v63, %v1676
    %v1678 = vand.u32 %v1677, 4294901760
    %1679 = vmatpush1.msra.mxu0 %v1678
    %1680 = vmatprep.subr.mxu0 0.0
    %v1681 = vand.u32 %v64, 4294901760
    %v1682 = vsub.f32 %v64, %v1681
    %v1683 = vand.u32 %v1682, 4294901760
    %1684 = vmatpush1.msra.mxu0 %v1683
    %1685 = vmatprep.subr.mxu0 0.0
    %v1686 = vand.u32 %v65, 4294901760
    %v1687 = vsub.f32 %v65, %v1686
    %v1688 = vand.u32 %v1687, 4294901760
    %1689 = vmatpush1.msra.mxu0 %v1688
    %1690 = vmatprep.subr.mxu0 0.0
    %v1691 = vand.u32 %v66, 4294901760
    %v1692 = vsub.f32 %v66, %v1691
    %v1693 = vand.u32 %v1692, 4294901760
    %1694 = vmatpush1.msra.mxu0 %v1693
    %1695 = vmatprep.subr.mxu0 0.0
    %v1696 = vand.u32 %v67, 4294901760
    %v1697 = vsub.f32 %v67, %v1696
    %v1698 = vand.u32 %v1697, 4294901760
    %1699 = vmatpush1.msra.mxu0 %v1698
    %1700 = vmatprep.subr.mxu0 0.0
    %v1701 = vand.u32 %v68, 4294901760
    %v1702 = vsub.f32 %v68, %v1701
    %v1703 = vand.u32 %v1702, 4294901760
    %1704 = vmatpush1.msra.mxu0 %v1703
    %1705 = vmatprep.subr.mxu0 0.0
    %v1706 = vand.u32 %v69, 4294901760
    %v1707 = vsub.f32 %v69, %v1706
    %v1708 = vand.u32 %v1707, 4294901760
    %1709 = vmatpush1.msra.mxu0 %v1708
    %1710 = vmatprep.subr.mxu0 0.0
    %v1711 = vand.u32 %v70, 4294901760
    %v1712 = vsub.f32 %v70, %v1711
    %v1713 = vand.u32 %v1712, 4294901760
    %1714 = vmatpush1.msra.mxu0 %v1713
    %1715 = vmatprep.subr.mxu0 0.0
    %v1716 = vand.u32 %v71, 4294901760
    %v1717 = vsub.f32 %v71, %v1716
    %v1718 = vand.u32 %v1717, 4294901760
    %1719 = vmatpush1.msra.mxu0 %v1718
    %1720 = vmatprep.subr.mxu0 0.0
    %v1721 = vand.u32 %v72, 4294901760
    %v1722 = vsub.f32 %v72, %v1721
    %v1723 = vand.u32 %v1722, 4294901760
    %1724 = vmatpush1.msra.mxu0 %v1723
    %1725 = vmatprep.subr.mxu0 0.0
    %v1726 = vand.u32 %v73, 4294901760
    %v1727 = vsub.f32 %v73, %v1726
    %v1728 = vand.u32 %v1727, 4294901760
    %1729 = vmatpush1.msra.mxu0 %v1728
    %1730 = vmatprep.subr.mxu0 0.0
    %v1731 = vand.u32 %v74, 4294901760
    %v1732 = vsub.f32 %v74, %v1731
    %v1733 = vand.u32 %v1732, 4294901760
    %1734 = vmatpush1.msra.mxu0 %v1733
    %1735 = vmatprep.subr.mxu0 0.0
    %1736 = vmatpush1.msra.mxu0 0.0
    %1737 = vmatprep.subr.mxu0 0.0
    %1738 = vmatpush1.msra.mxu0 0.0
    %1739 = vmatprep.subr.mxu0 0.0
    %1740 = vmatpush1.msra.mxu0 0.0
    %1741 = vmatprep.subr.mxu0 0.0
    %1742 = vmatpush1.msra.mxu0 0.0
    %1743 = vmatprep.subr.mxu0 0.0
    %1744 = vmatpush1.msra.mxu0 0.0
    %1745 = vmatprep.subr.mxu0 0.0
    %1746 = vmatpush1.msra.mxu0 0.0
    %1747 = vmatprep.subr.mxu0 0.0
    %1748 = vmatpush1.msra.mxu0 0.0
    %1749 = vmatprep.subr.mxu0 0.0
    %1750 = vmatpush1.msra.mxu0 0.0
    %1751 = vmatprep.subr.mxu0 0.0
    %1752 = vmatpush1.msra.mxu0 0.0
    %1753 = vmatprep.subr.mxu0 0.0
    %1754 = vmatpush1.msra.mxu0 0.0
    %1755 = vmatprep.subr.mxu0 0.0
    %1756 = vmatpush1.msra.mxu0 0.0
    %1757 = vmatprep.subr.mxu0 0.0
    %1758 = vmatpush1.msra.mxu0 0.0
    %1759 = vmatprep.subr.mxu0 0.0
    %1760 = vmatpush1.msra.mxu0 0.0
    %1761 = vmatprep.subr.mxu0 0.0
    %1762 = vmatpush1.msra.mxu0 0.0
    %1763 = vmatprep.subr.mxu0 0.0
    %1764 = vmatpush1.msra.mxu0 0.0
    %1765 = vmatprep.subr.mxu0 0.0
    %1766 = vmatpush1.msra.mxu0 0.0
    %1767 = vmatprep.mubr.f32.mxu0 0.0
    %v1768 = vand.u32 %v1215, 4294901760
    %1769 = vmatmul.mubr.f32.gmra.mrb[0].mxu0 %v1768
    %v1770 = vpop.f32.mrb[0].mxu0
    %v1771 = vadd.f32 %v1652, %v1770
    %v1772 = vpop.f32.mrb[0].mxu0
    %1773 = vdwg.mxu0
    %1774 = vmatprep.subr.mxu0 0.0
    %v1775 = vand.u32 %v59, 4294901760
    %1776 = vmatpush1.msra.mxu0 %v1775
    %1777 = vmatprep.subr.mxu0 0.0
    %v1778 = vand.u32 %v60, 4294901760
    %1779 = vmatpush1.msra.mxu0 %v1778
    %1780 = vmatprep.subr.mxu0 0.0
    %v1781 = vand.u32 %v61, 4294901760
    %1782 = vmatpush1.msra.mxu0 %v1781
    %1783 = vmatprep.subr.mxu0 0.0
    %v1784 = vand.u32 %v62, 4294901760
    %1785 = vmatpush1.msra.mxu0 %v1784
    %1786 = vmatprep.subr.mxu0 0.0
    %v1787 = vand.u32 %v63, 4294901760
    %1788 = vmatpush1.msra.mxu0 %v1787
    %1789 = vmatprep.subr.mxu0 0.0
    %v1790 = vand.u32 %v64, 4294901760
    %1791 = vmatpush1.msra.mxu0 %v1790
    %1792 = vmatprep.subr.mxu0 0.0
    %v1793 = vand.u32 %v65, 4294901760
    %1794 = vmatpush1.msra.mxu0 %v1793
    %1795 = vmatprep.subr.mxu0 0.0
    %v1796 = vand.u32 %v66, 4294901760
    %1797 = vmatpush1.msra.mxu0 %v1796
    %1798 = vmatprep.subr.mxu0 0.0
    %v1799 = vand.u32 %v67, 4294901760
    %1800 = vmatpush1.msra.mxu0 %v1799
    %1801 = vmatprep.subr.mxu0 0.0
    %v1802 = vand.u32 %v68, 4294901760
    %1803 = vmatpush1.msra.mxu0 %v1802
    %1804 = vmatprep.subr.mxu0 0.0
    %v1805 = vand.u32 %v69, 4294901760
    %1806 = vmatpush1.msra.mxu0 %v1805
    %1807 = vmatprep.subr.mxu0 0.0
    %v1808 = vand.u32 %v70, 4294901760
    %1809 = vmatpush1.msra.mxu0 %v1808
    %1810 = vmatprep.subr.mxu0 0.0
    %v1811 = vand.u32 %v71, 4294901760
    %1812 = vmatpush1.msra.mxu0 %v1811
    %1813 = vmatprep.subr.mxu0 0.0
    %v1814 = vand.u32 %v72, 4294901760
    %1815 = vmatpush1.msra.mxu0 %v1814
    %1816 = vmatprep.subr.mxu0 0.0
    %v1817 = vand.u32 %v73, 4294901760
    %1818 = vmatpush1.msra.mxu0 %v1817
    %1819 = vmatprep.subr.mxu0 0.0
    %v1820 = vand.u32 %v74, 4294901760
    %1821 = vmatpush1.msra.mxu0 %v1820
    %1822 = vmatprep.subr.mxu0 0.0
    %1823 = vmatpush1.msra.mxu0 0.0
    %1824 = vmatprep.subr.mxu0 0.0
    %1825 = vmatpush1.msra.mxu0 0.0
    %1826 = vmatprep.subr.mxu0 0.0
    %1827 = vmatpush1.msra.mxu0 0.0
    %1828 = vmatprep.subr.mxu0 0.0
    %1829 = vmatpush1.msra.mxu0 0.0
    %1830 = vmatprep.subr.mxu0 0.0
    %1831 = vmatpush1.msra.mxu0 0.0
    %1832 = vmatprep.subr.mxu0 0.0
    %1833 = vmatpush1.msra.mxu0 0.0
    %1834 = vmatprep.subr.mxu0 0.0
    %1835 = vmatpush1.msra.mxu0 0.0
    %1836 = vmatprep.subr.mxu0 0.0
    %1837 = vmatpush1.msra.mxu0 0.0
    %1838 = vmatprep.subr.mxu0 0.0
    %1839 = vmatpush1.msra.mxu0 0.0
    %1840 = vmatprep.subr.mxu0 0.0
    %1841 = vmatpush1.msra.mxu0 0.0
    %1842 = vmatprep.subr.mxu0 0.0
    %1843 = vmatpush1.msra.mxu0 0.0
    %1844 = vmatprep.subr.mxu0 0.0
    %1845 = vmatpush1.msra.mxu0 0.0
    %1846 = vmatprep.subr.mxu0 0.0
    %1847 = vmatpush1.msra.mxu0 0.0
    %1848 = vmatprep.subr.mxu0 0.0
    %1849 = vmatpush1.msra.mxu0 0.0
    %1850 = vmatprep.subr.mxu0 0.0
    %1851 = vmatpush1.msra.mxu0 0.0
    %1852 = vmatprep.subr.mxu0 0.0
    %1853 = vmatpush1.msra.mxu0 0.0
    %1854 = vmatprep.mubr.f32.mxu0 0.0
    %v1855 = vand.u32 %v1215, 4294901760
    %1856 = vmatmul.mubr.f32.gmra.mrb[0].mxu0 %v1855
    %v1857 = vpop.f32.mrb[0].mxu0
    %v1858 = vadd.f32 %v1771, %v1857
    %v1859 = vpop.f32.mrb[0].mxu0
    %1860 = vdwg.mxu0
    %vm1861 = vcmask 64512
    %1862 = vst.msk [vmem:[#allocation7] sm:$0xff] %vm1861, %v1858
    // Predicated region
    $region18: #{tpu_custom_call.1} parent=1 // pred_check
      _
    $region19: #{tpu_custom_call.1} parent=1 // pred_check_branch
      %1864 = sbr.rel (0) target = $region21
    $region20: #{tpu_custom_call.1} parent=1 // pred_region
      %s1866 = ssub.s32 128, 128
      %1867 = vsyncadd [#allocation4], %s1866
      %s1869 = sshll.u32 [#allocation7], 4
      %s1870 = int_to_ptr.vmem [resolvable:$true] %s1869
      %1872 = dma.vmem_to_hbm [thread:$0]  %s1870, 128, %s2, [#allocation4]
    $region21: #{tpu_custom_call.1} parent=1 // pred_fallthru
      _
    // Predicated region
    $region22: #{tpu_custom_call.1} parent=1 // pred_check
      _
    $region23: #{tpu_custom_call.1} parent=1 // pred_check_branch
      %1874 = sbr.rel (0) target = $region25
    $region24: #{tpu_custom_call.1} parent=1 // pred_region
      %1875 = dma.done [#allocation4], 128
    $region25: #{tpu_custom_call.1} parent=1 // pred_fallthru
      _
    %1876 = vsyncpa [#allocation3], 1
    %1877 = vsyncpa [#allocation6], 1
    %1878 = vsyncpa [#allocation4], 1

</llo_original>
